<compile_context>
chip_gen: v7x
topology: tpu7x:2x2x1
jax: 0.10.0
libtpu: 0.0.40
codegen_flags: <defaults>
</compile_context>

<pallas_src>
import jax
import jax.numpy as jnp
from jax import lax
from jax.experimental import pallas as pl
from jax.experimental.pallas import tpu as pltpu

HIDDEN = 16       # hidden_units default in RNN_model
IN_SIZE = 27      # LSTM input size
GUESS = 26        # prev_guess feature dim
TARGET = 26       # fc output dim
EPS = 1e-5        # BatchNorm1d eps
DROPOUT_P = 0.1   # LockedDropout p
SLAB_W = 4 * HIDDEN   # parameter-slab lane width (widest section = 4H)


def _align8(n):
    return (n + 7) // 8 * 8


def _slab_layout(B):
    """Row offsets of each parameter section inside the packed (rows, 4H) slab.
    Sections start at 8-row (sublane-tile) boundaries so in-kernel slices are aligned."""
    L = {}
    L["wih"] = 0                                   # (IN_SIZE, 4H)
    L["whh"] = _align8(L["wih"] + IN_SIZE)         # (HIDDEN, 4H)
    L["b"] = _align8(L["whh"] + HIDDEN)            # (1, 4H)
    L["gamma"] = L["b"] + 1                        # (1, HIDDEN)
    L["beta"] = L["gamma"] + 1                     # (1, HIDDEN)
    L["bfc"] = L["beta"] + 1                       # (1, TARGET)
    L["mask"] = _align8(L["bfc"] + 1)              # (B, HIDDEN)
    L["wfc_h"] = _align8(L["mask"] + B)            # (HIDDEN, TARGET)
    L["wfc_g"] = _align8(L["wfc_h"] + HIDDEN)      # (GUESS, TARGET)
    L["rows"] = _align8(L["wfc_g"] + GUESS)
    return L


def _pack_params(params, mask_scaled, B, L):
    """Pack all small parameter arrays into one zero-padded f32 slab (one DMA).
    In real use this is done once per model, not per forward call."""
    slab = jnp.zeros((L["rows"], SLAB_W), jnp.float32)
    slab = slab.at[L["wih"]:L["wih"] + IN_SIZE, :].set(params["wih"])
    slab = slab.at[L["whh"]:L["whh"] + HIDDEN, :].set(params["whh"])
    slab = slab.at[L["b"], :].set(params["b"][0])
    slab = slab.at[L["gamma"], :HIDDEN].set(params["gamma"][0])
    slab = slab.at[L["beta"], :HIDDEN].set(params["beta"][0])
    slab = slab.at[L["bfc"], :TARGET].set(params["bfc"][0])
    slab = slab.at[L["mask"]:L["mask"] + B, :HIDDEN].set(mask_scaled)
    slab = slab.at[L["wfc_h"]:L["wfc_h"] + HIDDEN, :TARGET].set(params["wfc_h"])
    slab = slab.at[L["wfc_g"]:L["wfc_g"] + GUESS, :TARGET].set(params["wfc_g"])
    return slab


def _make_kernel(T, B, L):
    def kernel(x_ref, pg_ref, p_ref, out_ref):
        # ---- one-time parameter loads (static slices of the single packed slab) ----
        wih = p_ref[pl.ds(L["wih"], IN_SIZE), :]               # (27, 4H)
        whh = p_ref[pl.ds(L["whh"], HIDDEN), :]                # (H, 4H)
        b = p_ref[pl.ds(L["b"], 1), :]                         # (1, 4H)
        gamma = p_ref[pl.ds(L["gamma"], 1), pl.ds(0, HIDDEN)]  # (1, H)
        beta = p_ref[pl.ds(L["beta"], 1), pl.ds(0, HIDDEN)]    # (1, H)
        bfc = p_ref[pl.ds(L["bfc"], 1), pl.ds(0, TARGET)]      # (1, 26)
        mask = p_ref[pl.ds(L["mask"], B), pl.ds(0, HIDDEN)]    # (B, H), pre-scaled
        wfc_h = p_ref[pl.ds(L["wfc_h"], HIDDEN), pl.ds(0, TARGET)]  # (H, 26)
        wfc_g = p_ref[pl.ds(L["wfc_g"], GUESS), pl.ds(0, TARGET)]   # (26, 26)

        # ---- hoisted, non-recurrent matmuls (off the serial chain) ----
        # Bias folded into the input projection: one broadcast add on the whole slab.
        x_proj = jnp.dot(x_ref[...], wih,
                         preferred_element_type=jnp.float32) + b        # (T*B, 4H)
        pg_proj = jnp.dot(pg_ref[...], wfc_g,
                          preferred_element_type=jnp.float32)           # (T, 26)

        # ---- serial recurrence: ONLY gates -> c -> h is loop-carried ----
        # (jnp.dot(h, whh) stays on the MXU; a VPU broadcast-mul formulation or
        #  explicit matmul_push_rhs weight-stationary driving are possible tweaks for
        #  v5e/v6e but need on-chip benchmarking before committing.)
        h = jnp.zeros((B, HIDDEN), jnp.float32)
        c = jnp.zeros((B, HIDDEN), jnp.float32)
        h_steps = []
        for t in range(T):
            gates = (x_proj[t * B:(t + 1) * B, :]
                     + jnp.dot(h, whh, preferred_element_type=jnp.float32))  # (B, 4H)
            s = jax.nn.sigmoid(gates)        # one EUP pass over the whole gate tile
            th = jnp.tanh(gates)             # one EUP pass
            i_g = s[:, 0 * HIDDEN:1 * HIDDEN]
            f_g = s[:, 1 * HIDDEN:2 * HIDDEN]
            g_g = th[:, 2 * HIDDEN:3 * HIDDEN]
            o_g = s[:, 3 * HIDDEN:4 * HIDDEN]
            c = f_g * c + i_g * g_g
            h = o_g * jnp.tanh(c)
            h_steps.append(h)                # stays in vregs; nothing else loop-carried

        # ---- post-pass, off the serial chain: BatchNorm + LockedDropout + max-pool ----
        pooled_rows = []
        for t in range(T):
            ht = h_steps[t]
            mean = jnp.mean(ht, axis=0, keepdims=True)
            var = jnp.mean((ht - mean) ** 2, axis=0, keepdims=True)   # biased variance
            # lax.rsqrt is the (slightly approximate) EUP path; fine at 1e-4 tolerance.
            hbn = (ht - mean) * lax.rsqrt(var + EPS) * gamma + beta
            hd = hbn * mask                                            # LockedDropout
            pooled_rows.append(jnp.max(hd, axis=0, keepdims=True))     # max over batch
        pooled = jnp.concatenate(pooled_rows, axis=0)                  # (T, H), in vregs

        # ---- fc for all timesteps at once + single lane-dense store ----
        out_ref[...] = (jnp.dot(pooled, wfc_h, preferred_element_type=jnp.float32)
                        + pg_proj + bfc)                               # (T, 26)

    return kernel


def rnn_forward(obscure_word, prev_guess, params, mask_scaled):
    T, B, _ = obscure_word.shape
    L = _slab_layout(B)
    slab = _pack_params(params, mask_scaled, B, L)
    # Flatten time into the sublane axis so the hoisted input projection sees one slab.
    x_flat = obscure_word.reshape(T * B, IN_SIZE)

    vmem = lambda: pl.BlockSpec(memory_space=pltpu.MemorySpace.VMEM)
    out = pl.pallas_call(
        _make_kernel(T, B, L),
        out_shape=jax.ShapeDtypeStruct((T, TARGET), jnp.float32),
        in_specs=[vmem(), vmem(), vmem()],
        out_specs=vmem(),
    )(x_flat, prev_guess, slab)
    # Restore the PyTorch output shape (T, 1, TARGET) — metadata-only reshape.
    return out.reshape(T, 1, TARGET)


def ref_forward(x, pg, params, mask_scaled):
    """Pure-JAX reference mirroring the PyTorch training-mode forward."""
    T, B, _ = x.shape
    h = jnp.zeros((B, HIDDEN), jnp.float32)
    c = jnp.zeros((B, HIDDEN), jnp.float32)
    outs = []
    for t in range(T):
        gates = x[t] @ params["wih"] + h @ params["whh"] + params["b"]
        i = jax.nn.sigmoid(gates[:, 0:HIDDEN])
        f = jax.nn.sigmoid(gates[:, HIDDEN:2 * HIDDEN])
        g = jnp.tanh(gates[:, 2 * HIDDEN:3 * HIDDEN])
        o = jax.nn.sigmoid(gates[:, 3 * HIDDEN:4 * HIDDEN])
        c = f * c + i * g
        h = o * jnp.tanh(c)
        mean = h.mean(0, keepdims=True)
        var = ((h - mean) ** 2).mean(0, keepdims=True)
        hbn = (h - mean) / jnp.sqrt(var + EPS) * params["gamma"] + params["beta"]
        hd = hbn * mask_scaled
        pooled = hd.max(0, keepdims=True)
        out = pooled @ params["wfc_h"] + pg[t:t + 1] @ params["wfc_g"] + params["bfc"]
        outs.append(out)
    return jnp.stack(outs)


if __name__ == "__main__":
    T, B = 8, 4
    key = jax.random.PRNGKey(0)
    keys = jax.random.split(key, 10)

    stdv = 1.0 / jnp.sqrt(HIDDEN)
    params = {
        # LSTMCell weights stored pre-transposed: (in, 4*H) / (H, 4*H); b = b_ih + b_hh
        "wih": jax.random.uniform(keys[0], (IN_SIZE, 4 * HIDDEN), jnp.float32, -stdv, stdv),
        "whh": jax.random.uniform(keys[1], (HIDDEN, 4 * HIDDEN), jnp.float32, -stdv, stdv),
        "b":   jax.random.uniform(keys[2], (1, 4 * HIDDEN), jnp.float32, -stdv, stdv),
        # BatchNorm1d init
        "gamma": jnp.ones((1, HIDDEN), jnp.float32),
        "beta":  jnp.zeros((1, HIDDEN), jnp.float32),
        # fc: Linear(H + 26, 26), weight split into hidden / guess halves (pre-transposed)
        "wfc_h": jax.random.uniform(keys[3], (HIDDEN, TARGET), jnp.float32, -0.15, 0.15),
        "wfc_g": jax.random.uniform(keys[4], (GUESS, TARGET), jnp.float32, -0.15, 0.15),
        "bfc":   jax.random.uniform(keys[5], (1, TARGET), jnp.float32, -0.15, 0.15),
    }

    # LockedDropout mask: sampled once (deterministically), shared across timesteps,
    # scaled by 1/(1-p) as in the PyTorch module.
    mask_scaled = (jax.random.bernoulli(keys[6], 1.0 - DROPOUT_P, (B, HIDDEN))
                   .astype(jnp.float32) / (1.0 - DROPOUT_P))

    obscure_word = jax.random.normal(keys[7], (T, B, IN_SIZE), jnp.float32)
    prev_guess = jax.random.normal(keys[8], (T, GUESS), jnp.float32)

    out = rnn_forward(obscure_word, prev_guess, params, mask_scaled)
    out = jax.block_until_ready(out)

    ref = ref_forward(obscure_word, prev_guess, params, mask_scaled)
    assert out.shape == (T, 1, TARGET)
    assert jnp.allclose(out, ref, atol=3e-4, rtol=3e-4), "mismatch vs JAX reference"

    print("KERNEL_OK")
</pallas_src>

<mosaic_0001>
module attributes {stable_mosaic.version = 11 : i64} {
  func.func @kernel(%arg0: memref<32x27xf32, #tpu.memory_space<vmem>>, %arg1: memref<8x26xf32, #tpu.memory_space<vmem>>, %arg2: memref<112x64xf32, #tpu.memory_space<vmem>>, %arg3: memref<8x26xf32, #tpu.memory_space<vmem>>) attributes {dimension_semantics = [], scalar_prefetch = 0 : i64, scratch_operands = 0 : i64, tpu.core_type = #tpu.core_type<tc>} {
    %c0 = arith.constant 0 : index
    %c0_0 = arith.constant 0 : index
    %0 = vector.load %arg2[%c0, %c0_0] : memref<112x64xf32, #tpu.memory_space<vmem>>, vector<27x64xf32>
    %c32 = arith.constant 32 : index
    %c0_1 = arith.constant 0 : index
    %1 = vector.load %arg2[%c32, %c0_1] : memref<112x64xf32, #tpu.memory_space<vmem>>, vector<16x64xf32>
    %c48 = arith.constant 48 : index
    %c0_2 = arith.constant 0 : index
    %2 = vector.load %arg2[%c48, %c0_2] : memref<112x64xf32, #tpu.memory_space<vmem>>, vector<1x64xf32>
    %c49 = arith.constant 49 : index
    %c0_3 = arith.constant 0 : index
    %3 = vector.load %arg2[%c49, %c0_3] : memref<112x64xf32, #tpu.memory_space<vmem>>, vector<1x16xf32>
    %c50 = arith.constant 50 : index
    %c0_4 = arith.constant 0 : index
    %4 = vector.load %arg2[%c50, %c0_4] : memref<112x64xf32, #tpu.memory_space<vmem>>, vector<1x16xf32>
    %c51 = arith.constant 51 : index
    %c0_5 = arith.constant 0 : index
    %5 = vector.load %arg2[%c51, %c0_5] : memref<112x64xf32, #tpu.memory_space<vmem>>, vector<1x26xf32>
    %c56 = arith.constant 56 : index
    %c0_6 = arith.constant 0 : index
    %6 = vector.load %arg2[%c56, %c0_6] : memref<112x64xf32, #tpu.memory_space<vmem>>, vector<4x16xf32>
    %c64 = arith.constant 64 : index
    %c0_7 = arith.constant 0 : index
    %7 = vector.load %arg2[%c64, %c0_7] : memref<112x64xf32, #tpu.memory_space<vmem>>, vector<16x26xf32>
    %c80 = arith.constant 80 : index
    %c0_8 = arith.constant 0 : index
    %8 = vector.load %arg2[%c80, %c0_8] : memref<112x64xf32, #tpu.memory_space<vmem>>, vector<26x26xf32>
    %c0_9 = arith.constant 0 : index
    %c0_10 = arith.constant 0 : index
    %9 = vector.load %arg0[%c0_9, %c0_10] : memref<32x27xf32, #tpu.memory_space<vmem>>, vector<32x27xf32>
    %cst = arith.constant dense<0.000000e+00> : vector<32x64xf32>
    %10 = tpu.matmul %9, %0, %cst {dimension_numbers = #tpu.dot_dimension_numbers<[1], [0], [0], [1], [0, 0, 1, 1], [], []>} : vector<32x27xf32>, vector<27x64xf32>, vector<32x64xf32> -> vector<32x64xf32>
    %11 = vector.broadcast %2 : vector<1x64xf32> to vector<32x64xf32>
    %12 = arith.addf %10, %11 : vector<32x64xf32>
    %c0_11 = arith.constant 0 : index
    %c0_12 = arith.constant 0 : index
    %13 = vector.load %arg1[%c0_11, %c0_12] : memref<8x26xf32, #tpu.memory_space<vmem>>, vector<8x26xf32>
    %cst_13 = arith.constant dense<0.000000e+00> : vector<8x26xf32>
    %14 = tpu.matmul %13, %8, %cst_13 {dimension_numbers = #tpu.dot_dimension_numbers<[1], [0], [0], [1], [0, 0, 1, 1], [], []>} : vector<8x26xf32>, vector<26x26xf32>, vector<8x26xf32> -> vector<8x26xf32>
    %cst_14 = arith.constant 0.000000e+00 : f32
    %15 = vector.broadcast %cst_14 : f32 to vector<4x16xf32>
    %cst_15 = arith.constant 0.000000e+00 : f32
    %16 = vector.broadcast %cst_15 : f32 to vector<4x16xf32>
    %17 = vector.extract_strided_slice %12 {offsets = [0, 0], sizes = [4, 64], strides = [1, 1]} : vector<32x64xf32> to vector<4x64xf32>
    %cst_16 = arith.constant dense<0.000000e+00> : vector<4x64xf32>
    %18 = tpu.matmul %15, %1, %cst_16 {dimension_numbers = #tpu.dot_dimension_numbers<[1], [0], [0], [1], [0, 0, 1, 1], [], []>} : vector<4x16xf32>, vector<16x64xf32>, vector<4x64xf32> -> vector<4x64xf32>
    %19 = arith.addf %17, %18 : vector<4x64xf32>
    %20 = arith.negf %19 : vector<4x64xf32>
    %21 = math.exp %20 : vector<4x64xf32>
    %cst_17 = arith.constant 1.000000e+00 : f32
    %22 = vector.broadcast %cst_17 : f32 to vector<4x64xf32>
    %23 = arith.addf %22, %21 : vector<4x64xf32>
    %24 = arith.divf %22, %23 : vector<4x64xf32>
    %25 = math.tanh %19 : vector<4x64xf32>
    %26 = vector.extract_strided_slice %24 {offsets = [0, 0], sizes = [4, 16], strides = [1, 1]} : vector<4x64xf32> to vector<4x16xf32>
    %27 = vector.extract_strided_slice %24 {offsets = [0, 16], sizes = [4, 16], strides = [1, 1]} : vector<4x64xf32> to vector<4x16xf32>
    %28 = vector.extract_strided_slice %25 {offsets = [0, 32], sizes = [4, 16], strides = [1, 1]} : vector<4x64xf32> to vector<4x16xf32>
    %29 = vector.extract_strided_slice %24 {offsets = [0, 48], sizes = [4, 16], strides = [1, 1]} : vector<4x64xf32> to vector<4x16xf32>
    %30 = arith.mulf %27, %16 : vector<4x16xf32>
    %31 = arith.mulf %26, %28 : vector<4x16xf32>
    %32 = arith.addf %30, %31 : vector<4x16xf32>
    %33 = math.tanh %32 : vector<4x16xf32>
    %34 = arith.mulf %29, %33 : vector<4x16xf32>
    %35 = vector.extract_strided_slice %12 {offsets = [4, 0], sizes = [4, 64], strides = [1, 1]} : vector<32x64xf32> to vector<4x64xf32>
    %cst_18 = arith.constant dense<0.000000e+00> : vector<4x64xf32>
    %36 = tpu.matmul %34, %1, %cst_18 {dimension_numbers = #tpu.dot_dimension_numbers<[1], [0], [0], [1], [0, 0, 1, 1], [], []>} : vector<4x16xf32>, vector<16x64xf32>, vector<4x64xf32> -> vector<4x64xf32>
    %37 = arith.addf %35, %36 : vector<4x64xf32>
    %38 = arith.negf %37 : vector<4x64xf32>
    %39 = math.exp %38 : vector<4x64xf32>
    %cst_19 = arith.constant 1.000000e+00 : f32
    %40 = vector.broadcast %cst_19 : f32 to vector<4x64xf32>
    %41 = arith.addf %40, %39 : vector<4x64xf32>
    %42 = arith.divf %40, %41 : vector<4x64xf32>
    %43 = math.tanh %37 : vector<4x64xf32>
    %44 = vector.extract_strided_slice %42 {offsets = [0, 0], sizes = [4, 16], strides = [1, 1]} : vector<4x64xf32> to vector<4x16xf32>
    %45 = vector.extract_strided_slice %42 {offsets = [0, 16], sizes = [4, 16], strides = [1, 1]} : vector<4x64xf32> to vector<4x16xf32>
    %46 = vector.extract_strided_slice %43 {offsets = [0, 32], sizes = [4, 16], strides = [1, 1]} : vector<4x64xf32> to vector<4x16xf32>
    %47 = vector.extract_strided_slice %42 {offsets = [0, 48], sizes = [4, 16], strides = [1, 1]} : vector<4x64xf32> to vector<4x16xf32>
    %48 = arith.mulf %45, %32 : vector<4x16xf32>
    %49 = arith.mulf %44, %46 : vector<4x16xf32>
    %50 = arith.addf %48, %49 : vector<4x16xf32>
    %51 = math.tanh %50 : vector<4x16xf32>
    %52 = arith.mulf %47, %51 : vector<4x16xf32>
    %53 = vector.extract_strided_slice %12 {offsets = [8, 0], sizes = [4, 64], strides = [1, 1]} : vector<32x64xf32> to vector<4x64xf32>
    %cst_20 = arith.constant dense<0.000000e+00> : vector<4x64xf32>
    %54 = tpu.matmul %52, %1, %cst_20 {dimension_numbers = #tpu.dot_dimension_numbers<[1], [0], [0], [1], [0, 0, 1, 1], [], []>} : vector<4x16xf32>, vector<16x64xf32>, vector<4x64xf32> -> vector<4x64xf32>
    %55 = arith.addf %53, %54 : vector<4x64xf32>
    %56 = arith.negf %55 : vector<4x64xf32>
    %57 = math.exp %56 : vector<4x64xf32>
    %cst_21 = arith.constant 1.000000e+00 : f32
    %58 = vector.broadcast %cst_21 : f32 to vector<4x64xf32>
    %59 = arith.addf %58, %57 : vector<4x64xf32>
    %60 = arith.divf %58, %59 : vector<4x64xf32>
    %61 = math.tanh %55 : vector<4x64xf32>
    %62 = vector.extract_strided_slice %60 {offsets = [0, 0], sizes = [4, 16], strides = [1, 1]} : vector<4x64xf32> to vector<4x16xf32>
    %63 = vector.extract_strided_slice %60 {offsets = [0, 16], sizes = [4, 16], strides = [1, 1]} : vector<4x64xf32> to vector<4x16xf32>
    %64 = vector.extract_strided_slice %61 {offsets = [0, 32], sizes = [4, 16], strides = [1, 1]} : vector<4x64xf32> to vector<4x16xf32>
    %65 = vector.extract_strided_slice %60 {offsets = [0, 48], sizes = [4, 16], strides = [1, 1]} : vector<4x64xf32> to vector<4x16xf32>
    %66 = arith.mulf %63, %50 : vector<4x16xf32>
    %67 = arith.mulf %62, %64 : vector<4x16xf32>
    %68 = arith.addf %66, %67 : vector<4x16xf32>
    %69 = math.tanh %68 : vector<4x16xf32>
    %70 = arith.mulf %65, %69 : vector<4x16xf32>
    %71 = vector.extract_strided_slice %12 {offsets = [12, 0], sizes = [4, 64], strides = [1, 1]} : vector<32x64xf32> to vector<4x64xf32>
    %cst_22 = arith.constant dense<0.000000e+00> : vector<4x64xf32>
    %72 = tpu.matmul %70, %1, %cst_22 {dimension_numbers = #tpu.dot_dimension_numbers<[1], [0], [0], [1], [0, 0, 1, 1], [], []>} : vector<4x16xf32>, vector<16x64xf32>, vector<4x64xf32> -> vector<4x64xf32>
    %73 = arith.addf %71, %72 : vector<4x64xf32>
    %74 = arith.negf %73 : vector<4x64xf32>
    %75 = math.exp %74 : vector<4x64xf32>
    %cst_23 = arith.constant 1.000000e+00 : f32
    %76 = vector.broadcast %cst_23 : f32 to vector<4x64xf32>
    %77 = arith.addf %76, %75 : vector<4x64xf32>
    %78 = arith.divf %76, %77 : vector<4x64xf32>
    %79 = math.tanh %73 : vector<4x64xf32>
    %80 = vector.extract_strided_slice %78 {offsets = [0, 0], sizes = [4, 16], strides = [1, 1]} : vector<4x64xf32> to vector<4x16xf32>
    %81 = vector.extract_strided_slice %78 {offsets = [0, 16], sizes = [4, 16], strides = [1, 1]} : vector<4x64xf32> to vector<4x16xf32>
    %82 = vector.extract_strided_slice %79 {offsets = [0, 32], sizes = [4, 16], strides = [1, 1]} : vector<4x64xf32> to vector<4x16xf32>
    %83 = vector.extract_strided_slice %78 {offsets = [0, 48], sizes = [4, 16], strides = [1, 1]} : vector<4x64xf32> to vector<4x16xf32>
    %84 = arith.mulf %81, %68 : vector<4x16xf32>
    %85 = arith.mulf %80, %82 : vector<4x16xf32>
    %86 = arith.addf %84, %85 : vector<4x16xf32>
    %87 = math.tanh %86 : vector<4x16xf32>
    %88 = arith.mulf %83, %87 : vector<4x16xf32>
    %89 = vector.extract_strided_slice %12 {offsets = [16, 0], sizes = [4, 64], strides = [1, 1]} : vector<32x64xf32> to vector<4x64xf32>
    %cst_24 = arith.constant dense<0.000000e+00> : vector<4x64xf32>
    %90 = tpu.matmul %88, %1, %cst_24 {dimension_numbers = #tpu.dot_dimension_numbers<[1], [0], [0], [1], [0, 0, 1, 1], [], []>} : vector<4x16xf32>, vector<16x64xf32>, vector<4x64xf32> -> vector<4x64xf32>
    %91 = arith.addf %89, %90 : vector<4x64xf32>
    %92 = arith.negf %91 : vector<4x64xf32>
    %93 = math.exp %92 : vector<4x64xf32>
    %cst_25 = arith.constant 1.000000e+00 : f32
    %94 = vector.broadcast %cst_25 : f32 to vector<4x64xf32>
    %95 = arith.addf %94, %93 : vector<4x64xf32>
    %96 = arith.divf %94, %95 : vector<4x64xf32>
    %97 = math.tanh %91 : vector<4x64xf32>
    %98 = vector.extract_strided_slice %96 {offsets = [0, 0], sizes = [4, 16], strides = [1, 1]} : vector<4x64xf32> to vector<4x16xf32>
    %99 = vector.extract_strided_slice %96 {offsets = [0, 16], sizes = [4, 16], strides = [1, 1]} : vector<4x64xf32> to vector<4x16xf32>
    %100 = vector.extract_strided_slice %97 {offsets = [0, 32], sizes = [4, 16], strides = [1, 1]} : vector<4x64xf32> to vector<4x16xf32>
    %101 = vector.extract_strided_slice %96 {offsets = [0, 48], sizes = [4, 16], strides = [1, 1]} : vector<4x64xf32> to vector<4x16xf32>
    %102 = arith.mulf %99, %86 : vector<4x16xf32>
    %103 = arith.mulf %98, %100 : vector<4x16xf32>
    %104 = arith.addf %102, %103 : vector<4x16xf32>
    %105 = math.tanh %104 : vector<4x16xf32>
    %106 = arith.mulf %101, %105 : vector<4x16xf32>
    %107 = vector.extract_strided_slice %12 {offsets = [20, 0], sizes = [4, 64], strides = [1, 1]} : vector<32x64xf32> to vector<4x64xf32>
    %cst_26 = arith.constant dense<0.000000e+00> : vector<4x64xf32>
    %108 = tpu.matmul %106, %1, %cst_26 {dimension_numbers = #tpu.dot_dimension_numbers<[1], [0], [0], [1], [0, 0, 1, 1], [], []>} : vector<4x16xf32>, vector<16x64xf32>, vector<4x64xf32> -> vector<4x64xf32>
    %109 = arith.addf %107, %108 : vector<4x64xf32>
    %110 = arith.negf %109 : vector<4x64xf32>
    %111 = math.exp %110 : vector<4x64xf32>
    %cst_27 = arith.constant 1.000000e+00 : f32
    %112 = vector.broadcast %cst_27 : f32 to vector<4x64xf32>
    %113 = arith.addf %112, %111 : vector<4x64xf32>
    %114 = arith.divf %112, %113 : vector<4x64xf32>
    %115 = math.tanh %109 : vector<4x64xf32>
    %116 = vector.extract_strided_slice %114 {offsets = [0, 0], sizes = [4, 16], strides = [1, 1]} : vector<4x64xf32> to vector<4x16xf32>
    %117 = vector.extract_strided_slice %114 {offsets = [0, 16], sizes = [4, 16], strides = [1, 1]} : vector<4x64xf32> to vector<4x16xf32>
    %118 = vector.extract_strided_slice %115 {offsets = [0, 32], sizes = [4, 16], strides = [1, 1]} : vector<4x64xf32> to vector<4x16xf32>
    %119 = vector.extract_strided_slice %114 {offsets = [0, 48], sizes = [4, 16], strides = [1, 1]} : vector<4x64xf32> to vector<4x16xf32>
    %120 = arith.mulf %117, %104 : vector<4x16xf32>
    %121 = arith.mulf %116, %118 : vector<4x16xf32>
    %122 = arith.addf %120, %121 : vector<4x16xf32>
    %123 = math.tanh %122 : vector<4x16xf32>
    %124 = arith.mulf %119, %123 : vector<4x16xf32>
    %125 = vector.extract_strided_slice %12 {offsets = [24, 0], sizes = [4, 64], strides = [1, 1]} : vector<32x64xf32> to vector<4x64xf32>
    %cst_28 = arith.constant dense<0.000000e+00> : vector<4x64xf32>
    %126 = tpu.matmul %124, %1, %cst_28 {dimension_numbers = #tpu.dot_dimension_numbers<[1], [0], [0], [1], [0, 0, 1, 1], [], []>} : vector<4x16xf32>, vector<16x64xf32>, vector<4x64xf32> -> vector<4x64xf32>
    %127 = arith.addf %125, %126 : vector<4x64xf32>
    %128 = arith.negf %127 : vector<4x64xf32>
    %129 = math.exp %128 : vector<4x64xf32>
    %cst_29 = arith.constant 1.000000e+00 : f32
    %130 = vector.broadcast %cst_29 : f32 to vector<4x64xf32>
    %131 = arith.addf %130, %129 : vector<4x64xf32>
    %132 = arith.divf %130, %131 : vector<4x64xf32>
    %133 = math.tanh %127 : vector<4x64xf32>
    %134 = vector.extract_strided_slice %132 {offsets = [0, 0], sizes = [4, 16], strides = [1, 1]} : vector<4x64xf32> to vector<4x16xf32>
    %135 = vector.extract_strided_slice %132 {offsets = [0, 16], sizes = [4, 16], strides = [1, 1]} : vector<4x64xf32> to vector<4x16xf32>
    %136 = vector.extract_strided_slice %133 {offsets = [0, 32], sizes = [4, 16], strides = [1, 1]} : vector<4x64xf32> to vector<4x16xf32>
    %137 = vector.extract_strided_slice %132 {offsets = [0, 48], sizes = [4, 16], strides = [1, 1]} : vector<4x64xf32> to vector<4x16xf32>
    %138 = arith.mulf %135, %122 : vector<4x16xf32>
    %139 = arith.mulf %134, %136 : vector<4x16xf32>
    %140 = arith.addf %138, %139 : vector<4x16xf32>
    %141 = math.tanh %140 : vector<4x16xf32>
    %142 = arith.mulf %137, %141 : vector<4x16xf32>
    %143 = vector.extract_strided_slice %12 {offsets = [28, 0], sizes = [4, 64], strides = [1, 1]} : vector<32x64xf32> to vector<4x64xf32>
    %cst_30 = arith.constant dense<0.000000e+00> : vector<4x64xf32>
    %144 = tpu.matmul %142, %1, %cst_30 {dimension_numbers = #tpu.dot_dimension_numbers<[1], [0], [0], [1], [0, 0, 1, 1], [], []>} : vector<4x16xf32>, vector<16x64xf32>, vector<4x64xf32> -> vector<4x64xf32>
    %145 = arith.addf %143, %144 : vector<4x64xf32>
    %146 = arith.negf %145 : vector<4x64xf32>
    %147 = math.exp %146 : vector<4x64xf32>
    %cst_31 = arith.constant 1.000000e+00 : f32
    %148 = vector.broadcast %cst_31 : f32 to vector<4x64xf32>
    %149 = arith.addf %148, %147 : vector<4x64xf32>
    %150 = arith.divf %148, %149 : vector<4x64xf32>
    %151 = math.tanh %145 : vector<4x64xf32>
    %152 = vector.extract_strided_slice %150 {offsets = [0, 0], sizes = [4, 16], strides = [1, 1]} : vector<4x64xf32> to vector<4x16xf32>
    %153 = vector.extract_strided_slice %150 {offsets = [0, 16], sizes = [4, 16], strides = [1, 1]} : vector<4x64xf32> to vector<4x16xf32>
    %154 = vector.extract_strided_slice %151 {offsets = [0, 32], sizes = [4, 16], strides = [1, 1]} : vector<4x64xf32> to vector<4x16xf32>
    %155 = vector.extract_strided_slice %150 {offsets = [0, 48], sizes = [4, 16], strides = [1, 1]} : vector<4x64xf32> to vector<4x16xf32>
    %156 = arith.mulf %153, %140 : vector<4x16xf32>
    %157 = arith.mulf %152, %154 : vector<4x16xf32>
    %158 = arith.addf %156, %157 : vector<4x16xf32>
    %159 = math.tanh %158 : vector<4x16xf32>
    %160 = arith.mulf %155, %159 : vector<4x16xf32>
    %cst_32 = arith.constant dense<0.000000e+00> : vector<16xf32>
    %161 = vector.multi_reduction <add>, %34, %cst_32 [0] : vector<4x16xf32> to vector<16xf32>
    %162 = vector.shape_cast %161 : vector<16xf32> to vector<1x16xf32>
    %cst_33 = arith.constant 4.000000e+00 : f32
    %163 = vector.broadcast %cst_33 : f32 to vector<1x16xf32>
    %164 = arith.divf %162, %163 : vector<1x16xf32>
    %165 = vector.broadcast %164 : vector<1x16xf32> to vector<4x16xf32>
    %166 = arith.subf %34, %165 : vector<4x16xf32>
    %167 = arith.mulf %166, %166 : vector<4x16xf32>
    %cst_34 = arith.constant dense<0.000000e+00> : vector<16xf32>
    %168 = vector.multi_reduction <add>, %167, %cst_34 [0] : vector<4x16xf32> to vector<16xf32>
    %169 = vector.shape_cast %168 : vector<16xf32> to vector<1x16xf32>
    %cst_35 = arith.constant 4.000000e+00 : f32
    %170 = vector.broadcast %cst_35 : f32 to vector<1x16xf32>
    %171 = arith.divf %169, %170 : vector<1x16xf32>
    %172 = vector.broadcast %164 : vector<1x16xf32> to vector<4x16xf32>
    %173 = arith.subf %34, %172 : vector<4x16xf32>
    %cst_36 = arith.constant 9.99999974E-6 : f32
    %174 = vector.broadcast %cst_36 : f32 to vector<1x16xf32>
    %175 = arith.addf %171, %174 : vector<1x16xf32>
    %176 = math.rsqrt %175 : vector<1x16xf32>
    %177 = vector.broadcast %176 : vector<1x16xf32> to vector<4x16xf32>
    %178 = arith.mulf %173, %177 : vector<4x16xf32>
    %179 = vector.broadcast %3 : vector<1x16xf32> to vector<4x16xf32>
    %180 = arith.mulf %178, %179 : vector<4x16xf32>
    %181 = vector.broadcast %4 : vector<1x16xf32> to vector<4x16xf32>
    %182 = arith.addf %180, %181 : vector<4x16xf32>
    %183 = arith.mulf %182, %6 : vector<4x16xf32>
    %cst_37 = arith.constant dense<0xFF800000> : vector<16xf32>
    %184 = vector.multi_reduction <maximumf>, %183, %cst_37 [0] : vector<4x16xf32> to vector<16xf32>
    %185 = vector.shape_cast %184 : vector<16xf32> to vector<1x16xf32>
    %cst_38 = arith.constant dense<0.000000e+00> : vector<16xf32>
    %186 = vector.multi_reduction <add>, %52, %cst_38 [0] : vector<4x16xf32> to vector<16xf32>
    %187 = vector.shape_cast %186 : vector<16xf32> to vector<1x16xf32>
    %cst_39 = arith.constant 4.000000e+00 : f32
    %188 = vector.broadcast %cst_39 : f32 to vector<1x16xf32>
    %189 = arith.divf %187, %188 : vector<1x16xf32>
    %190 = vector.broadcast %189 : vector<1x16xf32> to vector<4x16xf32>
    %191 = arith.subf %52, %190 : vector<4x16xf32>
    %192 = arith.mulf %191, %191 : vector<4x16xf32>
    %cst_40 = arith.constant dense<0.000000e+00> : vector<16xf32>
    %193 = vector.multi_reduction <add>, %192, %cst_40 [0] : vector<4x16xf32> to vector<16xf32>
    %194 = vector.shape_cast %193 : vector<16xf32> to vector<1x16xf32>
    %cst_41 = arith.constant 4.000000e+00 : f32
    %195 = vector.broadcast %cst_41 : f32 to vector<1x16xf32>
    %196 = arith.divf %194, %195 : vector<1x16xf32>
    %197 = vector.broadcast %189 : vector<1x16xf32> to vector<4x16xf32>
    %198 = arith.subf %52, %197 : vector<4x16xf32>
    %cst_42 = arith.constant 9.99999974E-6 : f32
    %199 = vector.broadcast %cst_42 : f32 to vector<1x16xf32>
    %200 = arith.addf %196, %199 : vector<1x16xf32>
    %201 = math.rsqrt %200 : vector<1x16xf32>
    %202 = vector.broadcast %201 : vector<1x16xf32> to vector<4x16xf32>
    %203 = arith.mulf %198, %202 : vector<4x16xf32>
    %204 = vector.broadcast %3 : vector<1x16xf32> to vector<4x16xf32>
    %205 = arith.mulf %203, %204 : vector<4x16xf32>
    %206 = vector.broadcast %4 : vector<1x16xf32> to vector<4x16xf32>
    %207 = arith.addf %205, %206 : vector<4x16xf32>
    %208 = arith.mulf %207, %6 : vector<4x16xf32>
    %cst_43 = arith.constant dense<0xFF800000> : vector<16xf32>
    %209 = vector.multi_reduction <maximumf>, %208, %cst_43 [0] : vector<4x16xf32> to vector<16xf32>
    %210 = vector.shape_cast %209 : vector<16xf32> to vector<1x16xf32>
    %cst_44 = arith.constant dense<0.000000e+00> : vector<16xf32>
    %211 = vector.multi_reduction <add>, %70, %cst_44 [0] : vector<4x16xf32> to vector<16xf32>
    %212 = vector.shape_cast %211 : vector<16xf32> to vector<1x16xf32>
    %cst_45 = arith.constant 4.000000e+00 : f32
    %213 = vector.broadcast %cst_45 : f32 to vector<1x16xf32>
    %214 = arith.divf %212, %213 : vector<1x16xf32>
    %215 = vector.broadcast %214 : vector<1x16xf32> to vector<4x16xf32>
    %216 = arith.subf %70, %215 : vector<4x16xf32>
    %217 = arith.mulf %216, %216 : vector<4x16xf32>
    %cst_46 = arith.constant dense<0.000000e+00> : vector<16xf32>
    %218 = vector.multi_reduction <add>, %217, %cst_46 [0] : vector<4x16xf32> to vector<16xf32>
    %219 = vector.shape_cast %218 : vector<16xf32> to vector<1x16xf32>
    %cst_47 = arith.constant 4.000000e+00 : f32
    %220 = vector.broadcast %cst_47 : f32 to vector<1x16xf32>
    %221 = arith.divf %219, %220 : vector<1x16xf32>
    %222 = vector.broadcast %214 : vector<1x16xf32> to vector<4x16xf32>
    %223 = arith.subf %70, %222 : vector<4x16xf32>
    %cst_48 = arith.constant 9.99999974E-6 : f32
    %224 = vector.broadcast %cst_48 : f32 to vector<1x16xf32>
    %225 = arith.addf %221, %224 : vector<1x16xf32>
    %226 = math.rsqrt %225 : vector<1x16xf32>
    %227 = vector.broadcast %226 : vector<1x16xf32> to vector<4x16xf32>
    %228 = arith.mulf %223, %227 : vector<4x16xf32>
    %229 = vector.broadcast %3 : vector<1x16xf32> to vector<4x16xf32>
    %230 = arith.mulf %228, %229 : vector<4x16xf32>
    %231 = vector.broadcast %4 : vector<1x16xf32> to vector<4x16xf32>
    %232 = arith.addf %230, %231 : vector<4x16xf32>
    %233 = arith.mulf %232, %6 : vector<4x16xf32>
    %cst_49 = arith.constant dense<0xFF800000> : vector<16xf32>
    %234 = vector.multi_reduction <maximumf>, %233, %cst_49 [0] : vector<4x16xf32> to vector<16xf32>
    %235 = vector.shape_cast %234 : vector<16xf32> to vector<1x16xf32>
    %cst_50 = arith.constant dense<0.000000e+00> : vector<16xf32>
    %236 = vector.multi_reduction <add>, %88, %cst_50 [0] : vector<4x16xf32> to vector<16xf32>
    %237 = vector.shape_cast %236 : vector<16xf32> to vector<1x16xf32>
    %cst_51 = arith.constant 4.000000e+00 : f32
    %238 = vector.broadcast %cst_51 : f32 to vector<1x16xf32>
    %239 = arith.divf %237, %238 : vector<1x16xf32>
    %240 = vector.broadcast %239 : vector<1x16xf32> to vector<4x16xf32>
    %241 = arith.subf %88, %240 : vector<4x16xf32>
    %242 = arith.mulf %241, %241 : vector<4x16xf32>
    %cst_52 = arith.constant dense<0.000000e+00> : vector<16xf32>
    %243 = vector.multi_reduction <add>, %242, %cst_52 [0] : vector<4x16xf32> to vector<16xf32>
    %244 = vector.shape_cast %243 : vector<16xf32> to vector<1x16xf32>
    %cst_53 = arith.constant 4.000000e+00 : f32
    %245 = vector.broadcast %cst_53 : f32 to vector<1x16xf32>
    %246 = arith.divf %244, %245 : vector<1x16xf32>
    %247 = vector.broadcast %239 : vector<1x16xf32> to vector<4x16xf32>
    %248 = arith.subf %88, %247 : vector<4x16xf32>
    %cst_54 = arith.constant 9.99999974E-6 : f32
    %249 = vector.broadcast %cst_54 : f32 to vector<1x16xf32>
    %250 = arith.addf %246, %249 : vector<1x16xf32>
    %251 = math.rsqrt %250 : vector<1x16xf32>
    %252 = vector.broadcast %251 : vector<1x16xf32> to vector<4x16xf32>
    %253 = arith.mulf %248, %252 : vector<4x16xf32>
    %254 = vector.broadcast %3 : vector<1x16xf32> to vector<4x16xf32>
    %255 = arith.mulf %253, %254 : vector<4x16xf32>
    %256 = vector.broadcast %4 : vector<1x16xf32> to vector<4x16xf32>
    %257 = arith.addf %255, %256 : vector<4x16xf32>
    %258 = arith.mulf %257, %6 : vector<4x16xf32>
    %cst_55 = arith.constant dense<0xFF800000> : vector<16xf32>
    %259 = vector.multi_reduction <maximumf>, %258, %cst_55 [0] : vector<4x16xf32> to vector<16xf32>
    %260 = vector.shape_cast %259 : vector<16xf32> to vector<1x16xf32>
    %cst_56 = arith.constant dense<0.000000e+00> : vector<16xf32>
    %261 = vector.multi_reduction <add>, %106, %cst_56 [0] : vector<4x16xf32> to vector<16xf32>
    %262 = vector.shape_cast %261 : vector<16xf32> to vector<1x16xf32>
    %cst_57 = arith.constant 4.000000e+00 : f32
    %263 = vector.broadcast %cst_57 : f32 to vector<1x16xf32>
    %264 = arith.divf %262, %263 : vector<1x16xf32>
    %265 = vector.broadcast %264 : vector<1x16xf32> to vector<4x16xf32>
    %266 = arith.subf %106, %265 : vector<4x16xf32>
    %267 = arith.mulf %266, %266 : vector<4x16xf32>
    %cst_58 = arith.constant dense<0.000000e+00> : vector<16xf32>
    %268 = vector.multi_reduction <add>, %267, %cst_58 [0] : vector<4x16xf32> to vector<16xf32>
    %269 = vector.shape_cast %268 : vector<16xf32> to vector<1x16xf32>
    %cst_59 = arith.constant 4.000000e+00 : f32
    %270 = vector.broadcast %cst_59 : f32 to vector<1x16xf32>
    %271 = arith.divf %269, %270 : vector<1x16xf32>
    %272 = vector.broadcast %264 : vector<1x16xf32> to vector<4x16xf32>
    %273 = arith.subf %106, %272 : vector<4x16xf32>
    %cst_60 = arith.constant 9.99999974E-6 : f32
    %274 = vector.broadcast %cst_60 : f32 to vector<1x16xf32>
    %275 = arith.addf %271, %274 : vector<1x16xf32>
    %276 = math.rsqrt %275 : vector<1x16xf32>
    %277 = vector.broadcast %276 : vector<1x16xf32> to vector<4x16xf32>
    %278 = arith.mulf %273, %277 : vector<4x16xf32>
    %279 = vector.broadcast %3 : vector<1x16xf32> to vector<4x16xf32>
    %280 = arith.mulf %278, %279 : vector<4x16xf32>
    %281 = vector.broadcast %4 : vector<1x16xf32> to vector<4x16xf32>
    %282 = arith.addf %280, %281 : vector<4x16xf32>
    %283 = arith.mulf %282, %6 : vector<4x16xf32>
    %cst_61 = arith.constant dense<0xFF800000> : vector<16xf32>
    %284 = vector.multi_reduction <maximumf>, %283, %cst_61 [0] : vector<4x16xf32> to vector<16xf32>
    %285 = vector.shape_cast %284 : vector<16xf32> to vector<1x16xf32>
    %cst_62 = arith.constant dense<0.000000e+00> : vector<16xf32>
    %286 = vector.multi_reduction <add>, %124, %cst_62 [0] : vector<4x16xf32> to vector<16xf32>
    %287 = vector.shape_cast %286 : vector<16xf32> to vector<1x16xf32>
    %cst_63 = arith.constant 4.000000e+00 : f32
    %288 = vector.broadcast %cst_63 : f32 to vector<1x16xf32>
    %289 = arith.divf %287, %288 : vector<1x16xf32>
    %290 = vector.broadcast %289 : vector<1x16xf32> to vector<4x16xf32>
    %291 = arith.subf %124, %290 : vector<4x16xf32>
    %292 = arith.mulf %291, %291 : vector<4x16xf32>
    %cst_64 = arith.constant dense<0.000000e+00> : vector<16xf32>
    %293 = vector.multi_reduction <add>, %292, %cst_64 [0] : vector<4x16xf32> to vector<16xf32>
    %294 = vector.shape_cast %293 : vector<16xf32> to vector<1x16xf32>
    %cst_65 = arith.constant 4.000000e+00 : f32
    %295 = vector.broadcast %cst_65 : f32 to vector<1x16xf32>
    %296 = arith.divf %294, %295 : vector<1x16xf32>
    %297 = vector.broadcast %289 : vector<1x16xf32> to vector<4x16xf32>
    %298 = arith.subf %124, %297 : vector<4x16xf32>
    %cst_66 = arith.constant 9.99999974E-6 : f32
    %299 = vector.broadcast %cst_66 : f32 to vector<1x16xf32>
    %300 = arith.addf %296, %299 : vector<1x16xf32>
    %301 = math.rsqrt %300 : vector<1x16xf32>
    %302 = vector.broadcast %301 : vector<1x16xf32> to vector<4x16xf32>
    %303 = arith.mulf %298, %302 : vector<4x16xf32>
    %304 = vector.broadcast %3 : vector<1x16xf32> to vector<4x16xf32>
    %305 = arith.mulf %303, %304 : vector<4x16xf32>
    %306 = vector.broadcast %4 : vector<1x16xf32> to vector<4x16xf32>
    %307 = arith.addf %305, %306 : vector<4x16xf32>
    %308 = arith.mulf %307, %6 : vector<4x16xf32>
    %cst_67 = arith.constant dense<0xFF800000> : vector<16xf32>
    %309 = vector.multi_reduction <maximumf>, %308, %cst_67 [0] : vector<4x16xf32> to vector<16xf32>
    %310 = vector.shape_cast %309 : vector<16xf32> to vector<1x16xf32>
    %cst_68 = arith.constant dense<0.000000e+00> : vector<16xf32>
    %311 = vector.multi_reduction <add>, %142, %cst_68 [0] : vector<4x16xf32> to vector<16xf32>
    %312 = vector.shape_cast %311 : vector<16xf32> to vector<1x16xf32>
    %cst_69 = arith.constant 4.000000e+00 : f32
    %313 = vector.broadcast %cst_69 : f32 to vector<1x16xf32>
    %314 = arith.divf %312, %313 : vector<1x16xf32>
    %315 = vector.broadcast %314 : vector<1x16xf32> to vector<4x16xf32>
    %316 = arith.subf %142, %315 : vector<4x16xf32>
    %317 = arith.mulf %316, %316 : vector<4x16xf32>
    %cst_70 = arith.constant dense<0.000000e+00> : vector<16xf32>
    %318 = vector.multi_reduction <add>, %317, %cst_70 [0] : vector<4x16xf32> to vector<16xf32>
    %319 = vector.shape_cast %318 : vector<16xf32> to vector<1x16xf32>
    %cst_71 = arith.constant 4.000000e+00 : f32
    %320 = vector.broadcast %cst_71 : f32 to vector<1x16xf32>
    %321 = arith.divf %319, %320 : vector<1x16xf32>
    %322 = vector.broadcast %314 : vector<1x16xf32> to vector<4x16xf32>
    %323 = arith.subf %142, %322 : vector<4x16xf32>
    %cst_72 = arith.constant 9.99999974E-6 : f32
    %324 = vector.broadcast %cst_72 : f32 to vector<1x16xf32>
    %325 = arith.addf %321, %324 : vector<1x16xf32>
    %326 = math.rsqrt %325 : vector<1x16xf32>
    %327 = vector.broadcast %326 : vector<1x16xf32> to vector<4x16xf32>
    %328 = arith.mulf %323, %327 : vector<4x16xf32>
    %329 = vector.broadcast %3 : vector<1x16xf32> to vector<4x16xf32>
    %330 = arith.mulf %328, %329 : vector<4x16xf32>
    %331 = vector.broadcast %4 : vector<1x16xf32> to vector<4x16xf32>
    %332 = arith.addf %330, %331 : vector<4x16xf32>
    %333 = arith.mulf %332, %6 : vector<4x16xf32>
    %cst_73 = arith.constant dense<0xFF800000> : vector<16xf32>
    %334 = vector.multi_reduction <maximumf>, %333, %cst_73 [0] : vector<4x16xf32> to vector<16xf32>
    %335 = vector.shape_cast %334 : vector<16xf32> to vector<1x16xf32>
    %cst_74 = arith.constant dense<0.000000e+00> : vector<16xf32>
    %336 = vector.multi_reduction <add>, %160, %cst_74 [0] : vector<4x16xf32> to vector<16xf32>
    %337 = vector.shape_cast %336 : vector<16xf32> to vector<1x16xf32>
    %cst_75 = arith.constant 4.000000e+00 : f32
    %338 = vector.broadcast %cst_75 : f32 to vector<1x16xf32>
    %339 = arith.divf %337, %338 : vector<1x16xf32>
    %340 = vector.broadcast %339 : vector<1x16xf32> to vector<4x16xf32>
    %341 = arith.subf %160, %340 : vector<4x16xf32>
    %342 = arith.mulf %341, %341 : vector<4x16xf32>
    %cst_76 = arith.constant dense<0.000000e+00> : vector<16xf32>
    %343 = vector.multi_reduction <add>, %342, %cst_76 [0] : vector<4x16xf32> to vector<16xf32>
    %344 = vector.shape_cast %343 : vector<16xf32> to vector<1x16xf32>
    %cst_77 = arith.constant 4.000000e+00 : f32
    %345 = vector.broadcast %cst_77 : f32 to vector<1x16xf32>
    %346 = arith.divf %344, %345 : vector<1x16xf32>
    %347 = vector.broadcast %339 : vector<1x16xf32> to vector<4x16xf32>
    %348 = arith.subf %160, %347 : vector<4x16xf32>
    %cst_78 = arith.constant 9.99999974E-6 : f32
    %349 = vector.broadcast %cst_78 : f32 to vector<1x16xf32>
    %350 = arith.addf %346, %349 : vector<1x16xf32>
    %351 = math.rsqrt %350 : vector<1x16xf32>
    %352 = vector.broadcast %351 : vector<1x16xf32> to vector<4x16xf32>
    %353 = arith.mulf %348, %352 : vector<4x16xf32>
    %354 = vector.broadcast %3 : vector<1x16xf32> to vector<4x16xf32>
    %355 = arith.mulf %353, %354 : vector<4x16xf32>
    %356 = vector.broadcast %4 : vector<1x16xf32> to vector<4x16xf32>
    %357 = arith.addf %355, %356 : vector<4x16xf32>
    %358 = arith.mulf %357, %6 : vector<4x16xf32>
    %cst_79 = arith.constant dense<0xFF800000> : vector<16xf32>
    %359 = vector.multi_reduction <maximumf>, %358, %cst_79 [0] : vector<4x16xf32> to vector<16xf32>
    %360 = vector.shape_cast %359 : vector<16xf32> to vector<1x16xf32>
    %361 = tpu.concatenate %185, %210, %235, %260, %285, %310, %335, %360 in 0 : vector<1x16xf32>, vector<1x16xf32>, vector<1x16xf32>, vector<1x16xf32>, vector<1x16xf32>, vector<1x16xf32>, vector<1x16xf32>, vector<1x16xf32> -> vector<8x16xf32>
    %cst_80 = arith.constant dense<0.000000e+00> : vector<8x26xf32>
    %362 = tpu.matmul %361, %7, %cst_80 {dimension_numbers = #tpu.dot_dimension_numbers<[1], [0], [0], [1], [0, 0, 1, 1], [], []>} : vector<8x16xf32>, vector<16x26xf32>, vector<8x26xf32> -> vector<8x26xf32>
    %363 = arith.addf %362, %14 : vector<8x26xf32>
    %364 = vector.broadcast %5 : vector<1x26xf32> to vector<8x26xf32>
    %365 = arith.addf %363, %364 : vector<8x26xf32>
    %c0_81 = arith.constant 0 : index
    %c0_82 = arith.constant 0 : index
    %366 = vector.load %arg3[%c0_81, %c0_82] : memref<8x26xf32, #tpu.memory_space<vmem>>, vector<8x26xf32>
    tpu.vector_store %arg3[%c0_81, %c0_82], %365 {strides = array<i32>} : memref<8x26xf32, #tpu.memory_space<vmem>>, vector<8x26xf32>,
    return
  }
}

</mosaic_0001>

<llo_original>
// kernel: tpu_custom_call.1
$region0: #{tpu_custom_call.1}
  #allocation0 [shape = 'u32[]', space=smem, size = 0x4, offset = 0x4, fixed_abs, tag = 'smem constant byte address 0x4 - core index']
  #allocation1 [shape = 'u32[144,128]{1,0:T(1,128)}', space=vmem, size = 0x12000, scoped, tag = 'internal scratch']
  %s0 = inlined_call_operand.vmem [shape: f32[32,27], index: 0, kind: input, shape index: {}]
  %s1 = inlined_call_operand.vmem [shape: f32[8,26], index: 1, kind: input, shape index: {}]
  %s2 = inlined_call_operand.vmem [shape: f32[112,64], index: 2, kind: input, shape index: {}]
  %s3 = inlined_call_operand.hbm [shape: f32[8,26], index: 3, kind: output, shape index: {}]
  %s4 = sld [smem:[#allocation0]]
  $region22: #{tpu_custom_call.1} parent=0
    _
  %s6 = ssub.s32 1, %s4
  %s7 = scalar_select 0, %s6, %s4
  $region1: #{tpu_custom_call.1} parent=0
    #allocation2 [shape = 'u8[4096]{0}', space=vmem, size = 0x1000, scoped, tag = 'output window, operand 0, single buffered']
    #allocation3 [shape = 's32[1]{0}', space=sflag, size = 0x4, scoped, tag = 'scoped memory for tpu_custom_call.1']
    %8 = vsyncpa [#allocation3], 0
    // Predicated region
    $region2: #{tpu_custom_call.1} parent=1 // pred_check
      _
    $region3: #{tpu_custom_call.1} parent=1 // pred_check_branch
      %10 = sbr.rel (0) target = $region5
    $region4: #{tpu_custom_call.1} parent=1 // pred_region
      _
    $region5: #{tpu_custom_call.1} parent=1 // pred_fallthru
      _
    // Predicated region
    $region6: #{tpu_custom_call.1} parent=1 // pred_check
      _
    $region7: #{tpu_custom_call.1} parent=1 // pred_check_branch
      %12 = sbr.rel (0) target = $region9
    $region8: #{tpu_custom_call.1} parent=1 // pred_region
      _
    $region9: #{tpu_custom_call.1} parent=1 // pred_fallthru
      _
    // Predicated region
    $region10: #{tpu_custom_call.1} parent=1 // pred_check
      _
    $region11: #{tpu_custom_call.1} parent=1 // pred_check_branch
      %14 = sbr.rel (0) target = $region13
    $region12: #{tpu_custom_call.1} parent=1 // pred_region
      _
    $region13: #{tpu_custom_call.1} parent=1 // pred_fallthru
      _
    %v15 = vld [vmem:[%s2] sm:$0xff]
    %v16 = vld [vmem:[%s2 + $0x8] sm:$0xff]
    %v17 = vld [vmem:[%s2 + $0x10] sm:$0xff]
    %v18 = vld [vmem:[%s2 + $0x18] sm:$0x7]
    %v19 = vld [vmem:[%s2 + $0x20] sm:$0xff]
    %v20 = vld [vmem:[%s2 + $0x28] sm:$0xff]
    %v21 = vld [vmem:[%s2 + $0x30] sm:$0x1]
    %v22 = vld [vmem:[%s2 + $0x31] sm:$0x1]
    %v23 = vld [vmem:[%s2 + $0x32] sm:$0x1]
    %v24 = vld [vmem:[%s2 + $0x33] sm:$0x1]
    %v25 = vld [vmem:[%s2 + $0x38] sm:$0xf]
    %v26 = vld [vmem:[%s2 + $0x40] sm:$0xff]
    %v27 = vld [vmem:[%s2 + $0x48] sm:$0xff]
    %v28 = vld [vmem:[%s2 + $0x50] sm:$0xff]
    %v29 = vld [vmem:[%s2 + $0x58] sm:$0xff]
    %v30 = vld [vmem:[%s2 + $0x60] sm:$0xff]
    %v31 = vld [vmem:[%s2 + $0x68] sm:$0x3]
    %v32 = vld [vmem:[%s0] sm:$0xff]
    %v33 = vld [vmem:[%s0 + $0x8] sm:$0xff]
    %v34 = vld [vmem:[%s0 + $0x10] sm:$0xff]
    %v35 = vld [vmem:[%s0 + $0x18] sm:$0xff]
    %v36 = vlaneseq
    %v37 = vshrl.u32 %v36, 7
    %v38 = vsub.s32 0, %v37
    %v39 = vrot.slane %v21, %v38
    %vm40 = vcmask 220160
    %v42 = vsel %vm40, %v32, 0
    %v45 = vsel %vm40, %v33, 0
    %v48 = vsel %vm40, %v34, 0
    %v51 = vsel %vm40, %v35, 0
    %vm53 = vcmask 1042432
    %v55 = vsel %vm53, %v18, 0
    %57 = vmatprep.subr.mxu0 0.0
    %58 = vmatpush1.msra.mxu0 %v15
    %59 = vmatprep.subr.mxu0 0.0
    %60 = vmatpush1.msra.mxu0 %v16
    %61 = vmatprep.subr.mxu0 0.0
    %62 = vmatpush1.msra.mxu0 %v17
    %63 = vmatprep.subr.mxu0 0.0
    %64 = vmatpush1.msra.mxu0 %v55
    %65 = vmatprep.subr.mxu0 0.0
    %66 = vmatpush1.msra.mxu0 0.0
    %67 = vmatprep.subr.mxu0 0.0
    %68 = vmatpush1.msra.mxu0 0.0
    %69 = vmatprep.subr.mxu0 0.0
    %70 = vmatpush1.msra.mxu0 0.0
    %71 = vmatprep.subr.mxu0 0.0
    %72 = vmatpush1.msra.mxu0 0.0
    %73 = vmatprep.subr.mxu0 0.0
    %74 = vmatpush1.msra.mxu0 0.0
    %75 = vmatprep.subr.mxu0 0.0
    %76 = vmatpush1.msra.mxu0 0.0
    %77 = vmatprep.subr.mxu0 0.0
    %78 = vmatpush1.msra.mxu0 0.0
    %79 = vmatprep.subr.mxu0 0.0
    %80 = vmatpush1.msra.mxu0 0.0
    %81 = vmatprep.subr.mxu0 0.0
    %82 = vmatpush1.msra.mxu0 0.0
    %83 = vmatprep.subr.mxu0 0.0
    %84 = vmatpush1.msra.mxu0 0.0
    %85 = vmatprep.subr.mxu0 0.0
    %86 = vmatpush1.msra.mxu0 0.0
    %87 = vmatprep.subr.mxu0 0.0
    %88 = vmatpush1.msra.mxu0 0.0
    %89 = vmatprep.subr.mxu0 0.0
    %90 = vmatpush1.msra.mxu0 0.0
    %91 = vmatprep.subr.mxu0 0.0
    %92 = vmatpush1.msra.mxu0 0.0
    %93 = vmatprep.subr.mxu0 0.0
    %94 = vmatpush1.msra.mxu0 0.0
    %95 = vmatprep.subr.mxu0 0.0
    %96 = vmatpush1.msra.mxu0 0.0
    %97 = vmatprep.subr.mxu0 0.0
    %98 = vmatpush1.msra.mxu0 0.0
    %99 = vmatprep.subr.mxu0 0.0
    %100 = vmatpush1.msra.mxu0 0.0
    %101 = vmatprep.subr.mxu0 0.0
    %102 = vmatpush1.msra.mxu0 0.0
    %103 = vmatprep.subr.mxu0 0.0
    %104 = vmatpush1.msra.mxu0 0.0
    %105 = vmatprep.subr.mxu0 0.0
    %106 = vmatpush1.msra.mxu0 0.0
    %107 = vmatprep.subr.mxu0 0.0
    %108 = vmatpush1.msra.mxu0 0.0
    %109 = vmatprep.subr.mxu0 0.0
    %110 = vmatpush1.msra.mxu0 0.0
    %111 = vmatprep.subr.mxu0 0.0
    %112 = vmatpush1.msra.mxu0 0.0
    %113 = vmatprep.subr.mxu0 0.0
    %114 = vmatpush1.msra.mxu0 0.0
    %115 = vmatprep.subr.mxu0 0.0
    %116 = vmatpush1.msra.mxu0 0.0
    %117 = vmatprep.subr.mxu0 0.0
    %118 = vmatpush1.msra.mxu0 0.0
    %119 = vmatprep.subr.mxu0 0.0
    %120 = vmatpush1.msra.mxu0 0.0
    %121 = vmatprep.mubr.f32.mxu0 0.0
    %122 = vmatmul.mubr.f32.gmra.mrb[0].mxu0 %v42
    %v123 = vpop.f32.mrb[0].mxu0
    %v124 = vadd.f32 %v39, %v123
    %v125 = vpop.f32.mrb[0].mxu0
    %126 = vmatprep.mubr.f32.mxu0 0.0
    %127 = vmatmul.mubr.f32.gmra.mrb[0].mxu0 %v45
    %v128 = vpop.f32.mrb[0].mxu0
    %v129 = vadd.f32 %v39, %v128
    %v130 = vpop.f32.mrb[0].mxu0
    %131 = vmatprep.mubr.f32.mxu0 0.0
    %132 = vmatmul.mubr.f32.gmra.mrb[0].mxu0 %v48
    %v133 = vpop.f32.mrb[0].mxu0
    %v134 = vadd.f32 %v39, %v133
    %v135 = vpop.f32.mrb[0].mxu0
    %136 = vmatprep.mubr.f32.mxu0 0.0
    %137 = vmatmul.mubr.f32.gmra.mrb[0].mxu0 %v51
    %v138 = vpop.f32.mrb[0].mxu0
    %v139 = vadd.f32 %v39, %v138
    %v140 = vpop.f32.mrb[0].mxu0
    %141 = vdwg.mxu0
    %v142 = vld [vmem:[%s1] sm:$0xff]
    %vm143 = vcmask 211968
    %v145 = vsel %vm143, %v142, 0
    %vm147 = vcmask 1041408
    %v149 = vsel %vm147, %v31, 0
    %151 = vmatprep.subr.mxu0 0.0
    %152 = vmatpush1.msra.mxu0 %v28
    %153 = vmatprep.subr.mxu0 0.0
    %154 = vmatpush1.msra.mxu0 %v29
    %155 = vmatprep.subr.mxu0 0.0
    %156 = vmatpush1.msra.mxu0 %v30
    %157 = vmatprep.subr.mxu0 0.0
    %158 = vmatpush1.msra.mxu0 %v149
    %159 = vmatprep.subr.mxu0 0.0
    %160 = vmatpush1.msra.mxu0 0.0
    %161 = vmatprep.subr.mxu0 0.0
    %162 = vmatpush1.msra.mxu0 0.0
    %163 = vmatprep.subr.mxu0 0.0
    %164 = vmatpush1.msra.mxu0 0.0
    %165 = vmatprep.subr.mxu0 0.0
    %166 = vmatpush1.msra.mxu0 0.0
    %167 = vmatprep.subr.mxu0 0.0
    %168 = vmatpush1.msra.mxu0 0.0
    %169 = vmatprep.subr.mxu0 0.0
    %170 = vmatpush1.msra.mxu0 0.0
    %171 = vmatprep.subr.mxu0 0.0
    %172 = vmatpush1.msra.mxu0 0.0
    %173 = vmatprep.subr.mxu0 0.0
    %174 = vmatpush1.msra.mxu0 0.0
    %175 = vmatprep.subr.mxu0 0.0
    %176 = vmatpush1.msra.mxu0 0.0
    %177 = vmatprep.subr.mxu0 0.0
    %178 = vmatpush1.msra.mxu0 0.0
    %179 = vmatprep.subr.mxu0 0.0
    %180 = vmatpush1.msra.mxu0 0.0
    %181 = vmatprep.subr.mxu0 0.0
    %182 = vmatpush1.msra.mxu0 0.0
    %183 = vmatprep.subr.mxu0 0.0
    %184 = vmatpush1.msra.mxu0 0.0
    %185 = vmatprep.subr.mxu0 0.0
    %186 = vmatpush1.msra.mxu0 0.0
    %187 = vmatprep.subr.mxu0 0.0
    %188 = vmatpush1.msra.mxu0 0.0
    %189 = vmatprep.subr.mxu0 0.0
    %190 = vmatpush1.msra.mxu0 0.0
    %191 = vmatprep.subr.mxu0 0.0
    %192 = vmatpush1.msra.mxu0 0.0
    %193 = vmatprep.subr.mxu0 0.0
    %194 = vmatpush1.msra.mxu0 0.0
    %195 = vmatprep.subr.mxu0 0.0
    %196 = vmatpush1.msra.mxu0 0.0
    %197 = vmatprep.subr.mxu0 0.0
    %198 = vmatpush1.msra.mxu0 0.0
    %199 = vmatprep.subr.mxu0 0.0
    %200 = vmatpush1.msra.mxu0 0.0
    %201 = vmatprep.subr.mxu0 0.0
    %202 = vmatpush1.msra.mxu0 0.0
    %203 = vmatprep.subr.mxu0 0.0
    %204 = vmatpush1.msra.mxu0 0.0
    %205 = vmatprep.subr.mxu0 0.0
    %206 = vmatpush1.msra.mxu0 0.0
    %207 = vmatprep.subr.mxu0 0.0
    %208 = vmatpush1.msra.mxu0 0.0
    %209 = vmatprep.subr.mxu0 0.0
    %210 = vmatpush1.msra.mxu0 0.0
    %211 = vmatprep.subr.mxu0 0.0
    %212 = vmatpush1.msra.mxu0 0.0
    %213 = vmatprep.subr.mxu0 0.0
    %214 = vmatpush1.msra.mxu0 0.0
    %215 = vmatprep.mubr.f32.mxu0 0.0
    %216 = vmatmul.mubr.f32.gmra.mrb[0].mxu0 %v145
    %v217 = vpop.f32.mrb[0].mxu0
    %v218 = vadd.f32 0.0, %v217
    %v219 = vpop.f32.mrb[0].mxu0
    %220 = vdwg.mxu0
    %vm221 = vcmask 130048
    %v223 = vsel %vm221, 0.0, 0
    %225 = vmatprep.subr.mxu0 0.0
    %226 = vmatpush1.msra.mxu0 %v19
    %227 = vmatprep.subr.mxu0 0.0
    %228 = vmatpush1.msra.mxu0 %v20
    %229 = vmatprep.subr.mxu0 0.0
    %230 = vmatpush1.msra.mxu0 0.0
    %231 = vmatprep.subr.mxu0 0.0
    %232 = vmatpush1.msra.mxu0 0.0
    %233 = vmatprep.subr.mxu0 0.0
    %234 = vmatpush1.msra.mxu0 0.0
    %235 = vmatprep.subr.mxu0 0.0
    %236 = vmatpush1.msra.mxu0 0.0
    %237 = vmatprep.subr.mxu0 0.0
    %238 = vmatpush1.msra.mxu0 0.0
    %239 = vmatprep.subr.mxu0 0.0
    %240 = vmatpush1.msra.mxu0 0.0
    %241 = vmatprep.subr.mxu0 0.0
    %242 = vmatpush1.msra.mxu0 0.0
    %243 = vmatprep.subr.mxu0 0.0
    %244 = vmatpush1.msra.mxu0 0.0
    %245 = vmatprep.subr.mxu0 0.0
    %246 = vmatpush1.msra.mxu0 0.0
    %247 = vmatprep.subr.mxu0 0.0
    %248 = vmatpush1.msra.mxu0 0.0
    %249 = vmatprep.subr.mxu0 0.0
    %250 = vmatpush1.msra.mxu0 0.0
    %251 = vmatprep.subr.mxu0 0.0
    %252 = vmatpush1.msra.mxu0 0.0
    %253 = vmatprep.subr.mxu0 0.0
    %254 = vmatpush1.msra.mxu0 0.0
    %255 = vmatprep.subr.mxu0 0.0
    %256 = vmatpush1.msra.mxu0 0.0
    %257 = vmatprep.subr.mxu0 0.0
    %258 = vmatpush1.msra.mxu0 0.0
    %259 = vmatprep.subr.mxu0 0.0
    %260 = vmatpush1.msra.mxu0 0.0
    %261 = vmatprep.subr.mxu0 0.0
    %262 = vmatpush1.msra.mxu0 0.0
    %263 = vmatprep.subr.mxu0 0.0
    %264 = vmatpush1.msra.mxu0 0.0
    %265 = vmatprep.subr.mxu0 0.0
    %266 = vmatpush1.msra.mxu0 0.0
    %267 = vmatprep.subr.mxu0 0.0
    %268 = vmatpush1.msra.mxu0 0.0
    %269 = vmatprep.subr.mxu0 0.0
    %270 = vmatpush1.msra.mxu0 0.0
    %271 = vmatprep.subr.mxu0 0.0
    %272 = vmatpush1.msra.mxu0 0.0
    %273 = vmatprep.subr.mxu0 0.0
    %274 = vmatpush1.msra.mxu0 0.0
    %275 = vmatprep.subr.mxu0 0.0
    %276 = vmatpush1.msra.mxu0 0.0
    %277 = vmatprep.subr.mxu0 0.0
    %278 = vmatpush1.msra.mxu0 0.0
    %279 = vmatprep.subr.mxu0 0.0
    %280 = vmatpush1.msra.mxu0 0.0
    %281 = vmatprep.subr.mxu0 0.0
    %282 = vmatpush1.msra.mxu0 0.0
    %283 = vmatprep.subr.mxu0 0.0
    %284 = vmatpush1.msra.mxu0 0.0
    %285 = vmatprep.subr.mxu0 0.0
    %286 = vmatpush1.msra.mxu0 0.0
    %287 = vmatprep.subr.mxu0 0.0
    %288 = vmatpush1.msra.mxu0 0.0
    %289 = vmatprep.mubr.f32.mxu0 0.0
    %290 = vmatmul.mubr.f32.gmra.mrb[0].mxu0 %v223
    %v291 = vpop.f32.mrb[0].mxu0
    %v292 = vadd.f32 0.0, %v291
    %v293 = vpop.f32.mrb[0].mxu0
    %294 = vdwg.mxu0
    %v295 = vadd.f32 %v124, %v292
    %v296 = vxor.u32 %v295, 2147483648
    %v297 = vmul.f32 %v296, 1.442695
    %v298 = vpow.pop %v297
    %v299 = vadd.f32 %v298, 1.0
    %v300 = vrcp.pop %v299
    %v301 = vmul.f32 1.0, %v300
    %v302 = vtanh.pop %v295
    %v303 = vmul.f32 %v301, 0.0
    %305 = vrot.lane.b32.xlu0 %v302, 96
    %v306 = vpop.permute.xlu0 %305
    %v308 = vmul.f32 %v301, %v306
    %310 = vrot.lane.b32.xlu0 %v308, 16
    %v311 = vpop.permute.xlu0 %310
    %v313 = vadd.f32 %v303, %v311
    %v314 = vtanh.pop %v313
    %316 = vrot.lane.b32.xlu0 %v314, 32
    %v317 = vpop.permute.xlu0 %316
    %v319 = vmul.f32 %v301, %v317
    %321 = vrot.lane.b32.xlu0 %v319, 80
    %v322 = vpop.permute.xlu0 %321
    %v323 = vsel %vm221, %v322, 0
    %325 = vmatprep.subr.mxu0 0.0
    %326 = vmatpush1.msra.mxu0 %v19
    %327 = vmatprep.subr.mxu0 0.0
    %328 = vmatpush1.msra.mxu0 %v20
    %329 = vmatprep.subr.mxu0 0.0
    %330 = vmatpush1.msra.mxu0 0.0
    %331 = vmatprep.subr.mxu0 0.0
    %332 = vmatpush1.msra.mxu0 0.0
    %333 = vmatprep.subr.mxu0 0.0
    %334 = vmatpush1.msra.mxu0 0.0
    %335 = vmatprep.subr.mxu0 0.0
    %336 = vmatpush1.msra.mxu0 0.0
    %337 = vmatprep.subr.mxu0 0.0
    %338 = vmatpush1.msra.mxu0 0.0
    %339 = vmatprep.subr.mxu0 0.0
    %340 = vmatpush1.msra.mxu0 0.0
    %341 = vmatprep.subr.mxu0 0.0
    %342 = vmatpush1.msra.mxu0 0.0
    %343 = vmatprep.subr.mxu0 0.0
    %344 = vmatpush1.msra.mxu0 0.0
    %345 = vmatprep.subr.mxu0 0.0
    %346 = vmatpush1.msra.mxu0 0.0
    %347 = vmatprep.subr.mxu0 0.0
    %348 = vmatpush1.msra.mxu0 0.0
    %349 = vmatprep.subr.mxu0 0.0
    %350 = vmatpush1.msra.mxu0 0.0
    %351 = vmatprep.subr.mxu0 0.0
    %352 = vmatpush1.msra.mxu0 0.0
    %353 = vmatprep.subr.mxu0 0.0
    %354 = vmatpush1.msra.mxu0 0.0
    %355 = vmatprep.subr.mxu0 0.0
    %356 = vmatpush1.msra.mxu0 0.0
    %357 = vmatprep.subr.mxu0 0.0
    %358 = vmatpush1.msra.mxu0 0.0
    %359 = vmatprep.subr.mxu0 0.0
    %360 = vmatpush1.msra.mxu0 0.0
    %361 = vmatprep.subr.mxu0 0.0
    %362 = vmatpush1.msra.mxu0 0.0
    %363 = vmatprep.subr.mxu0 0.0
    %364 = vmatpush1.msra.mxu0 0.0
    %365 = vmatprep.subr.mxu0 0.0
    %366 = vmatpush1.msra.mxu0 0.0
    %367 = vmatprep.subr.mxu0 0.0
    %368 = vmatpush1.msra.mxu0 0.0
    %369 = vmatprep.subr.mxu0 0.0
    %370 = vmatpush1.msra.mxu0 0.0
    %371 = vmatprep.subr.mxu0 0.0
    %372 = vmatpush1.msra.mxu0 0.0
    %373 = vmatprep.subr.mxu0 0.0
    %374 = vmatpush1.msra.mxu0 0.0
    %375 = vmatprep.subr.mxu0 0.0
    %376 = vmatpush1.msra.mxu0 0.0
    %377 = vmatprep.subr.mxu0 0.0
    %378 = vmatpush1.msra.mxu0 0.0
    %379 = vmatprep.subr.mxu0 0.0
    %380 = vmatpush1.msra.mxu0 0.0
    %381 = vmatprep.subr.mxu0 0.0
    %382 = vmatpush1.msra.mxu0 0.0
    %383 = vmatprep.subr.mxu0 0.0
    %384 = vmatpush1.msra.mxu0 0.0
    %385 = vmatprep.subr.mxu0 0.0
    %386 = vmatpush1.msra.mxu0 0.0
    %387 = vmatprep.subr.mxu0 0.0
    %388 = vmatpush1.msra.mxu0 0.0
    %389 = vmatprep.mubr.f32.mxu0 0.0
    %390 = vmatmul.mubr.f32.gmra.mrb[0].mxu0 %v323
    %v391 = vpop.f32.mrb[0].mxu0
    %v392 = vadd.f32 0.0, %v391
    %v393 = vpop.f32.mrb[0].mxu0
    %394 = vdwg.mxu0
    %v396 = vrot.slane %v392, 4
    %v398 = vadd.f32 %v124, %v396
    %v399 = vxor.u32 %v398, 2147483648
    %v400 = vmul.f32 %v399, 1.442695
    %v401 = vpow.pop %v400
    %v402 = vadd.f32 %v401, 1.0
    %v403 = vrcp.pop %v402
    %v404 = vmul.f32 1.0, %v403
    %v405 = vtanh.pop %v398
    %v407 = vrot.slane %v313, 4
    %v409 = vmul.f32 %v404, %v407
    %411 = vrot.lane.b32.xlu0 %v405, 96
    %v412 = vpop.permute.xlu0 %411
    %v414 = vmul.f32 %v404, %v412
    %416 = vrot.lane.b32.xlu0 %v414, 16
    %v417 = vpop.permute.xlu0 %416
    %v419 = vadd.f32 %v409, %v417
    %v420 = vtanh.pop %v419
    %422 = vrot.lane.b32.xlu0 %v420, 32
    %v423 = vpop.permute.xlu0 %422
    %v425 = vmul.f32 %v404, %v423
    %v427 = vrot.slane %v425, 4
    %428 = vrot.lane.b32.xlu0 %v427, 80
    %v429 = vpop.permute.xlu0 %428
    %v430 = vsel %vm221, %v429, 0
    %432 = vmatprep.subr.mxu0 0.0
    %433 = vmatpush1.msra.mxu0 %v19
    %434 = vmatprep.subr.mxu0 0.0
    %435 = vmatpush1.msra.mxu0 %v20
    %436 = vmatprep.subr.mxu0 0.0
    %437 = vmatpush1.msra.mxu0 0.0
    %438 = vmatprep.subr.mxu0 0.0
    %439 = vmatpush1.msra.mxu0 0.0
    %440 = vmatprep.subr.mxu0 0.0
    %441 = vmatpush1.msra.mxu0 0.0
    %442 = vmatprep.subr.mxu0 0.0
    %443 = vmatpush1.msra.mxu0 0.0
    %444 = vmatprep.subr.mxu0 0.0
    %445 = vmatpush1.msra.mxu0 0.0
    %446 = vmatprep.subr.mxu0 0.0
    %447 = vmatpush1.msra.mxu0 0.0
    %448 = vmatprep.subr.mxu0 0.0
    %449 = vmatpush1.msra.mxu0 0.0
    %450 = vmatprep.subr.mxu0 0.0
    %451 = vmatpush1.msra.mxu0 0.0
    %452 = vmatprep.subr.mxu0 0.0
    %453 = vmatpush1.msra.mxu0 0.0
    %454 = vmatprep.subr.mxu0 0.0
    %455 = vmatpush1.msra.mxu0 0.0
    %456 = vmatprep.subr.mxu0 0.0
    %457 = vmatpush1.msra.mxu0 0.0
    %458 = vmatprep.subr.mxu0 0.0
    %459 = vmatpush1.msra.mxu0 0.0
    %460 = vmatprep.subr.mxu0 0.0
    %461 = vmatpush1.msra.mxu0 0.0
    %462 = vmatprep.subr.mxu0 0.0
    %463 = vmatpush1.msra.mxu0 0.0
    %464 = vmatprep.subr.mxu0 0.0
    %465 = vmatpush1.msra.mxu0 0.0
    %466 = vmatprep.subr.mxu0 0.0
    %467 = vmatpush1.msra.mxu0 0.0
    %468 = vmatprep.subr.mxu0 0.0
    %469 = vmatpush1.msra.mxu0 0.0
    %470 = vmatprep.subr.mxu0 0.0
    %471 = vmatpush1.msra.mxu0 0.0
    %472 = vmatprep.subr.mxu0 0.0
    %473 = vmatpush1.msra.mxu0 0.0
    %474 = vmatprep.subr.mxu0 0.0
    %475 = vmatpush1.msra.mxu0 0.0
    %476 = vmatprep.subr.mxu0 0.0
    %477 = vmatpush1.msra.mxu0 0.0
    %478 = vmatprep.subr.mxu0 0.0
    %479 = vmatpush1.msra.mxu0 0.0
    %480 = vmatprep.subr.mxu0 0.0
    %481 = vmatpush1.msra.mxu0 0.0
    %482 = vmatprep.subr.mxu0 0.0
    %483 = vmatpush1.msra.mxu0 0.0
    %484 = vmatprep.subr.mxu0 0.0
    %485 = vmatpush1.msra.mxu0 0.0
    %486 = vmatprep.subr.mxu0 0.0
    %487 = vmatpush1.msra.mxu0 0.0
    %488 = vmatprep.subr.mxu0 0.0
    %489 = vmatpush1.msra.mxu0 0.0
    %490 = vmatprep.subr.mxu0 0.0
    %491 = vmatpush1.msra.mxu0 0.0
    %492 = vmatprep.subr.mxu0 0.0
    %493 = vmatpush1.msra.mxu0 0.0
    %494 = vmatprep.subr.mxu0 0.0
    %495 = vmatpush1.msra.mxu0 0.0
    %496 = vmatprep.mubr.f32.mxu0 0.0
    %497 = vmatmul.mubr.f32.gmra.mrb[0].mxu0 %v430
    %v498 = vpop.f32.mrb[0].mxu0
    %v499 = vadd.f32 0.0, %v498
    %v500 = vpop.f32.mrb[0].mxu0
    %501 = vdwg.mxu0
    %v502 = vadd.f32 %v129, %v499
    %v503 = vxor.u32 %v502, 2147483648
    %v504 = vmul.f32 %v503, 1.442695
    %v505 = vpow.pop %v504
    %v506 = vadd.f32 %v505, 1.0
    %v507 = vrcp.pop %v506
    %v508 = vmul.f32 1.0, %v507
    %v509 = vtanh.pop %v502
    %v511 = vrot.slane %v419, 4
    %v513 = vmul.f32 %v508, %v511
    %515 = vrot.lane.b32.xlu0 %v509, 96
    %v516 = vpop.permute.xlu0 %515
    %v518 = vmul.f32 %v508, %v516
    %520 = vrot.lane.b32.xlu0 %v518, 16
    %v521 = vpop.permute.xlu0 %520
    %v523 = vadd.f32 %v513, %v521
    %v524 = vtanh.pop %v523
    %526 = vrot.lane.b32.xlu0 %v524, 32
    %v527 = vpop.permute.xlu0 %526
    %v529 = vmul.f32 %v508, %v527
    %531 = vrot.lane.b32.xlu0 %v529, 80
    %v532 = vpop.permute.xlu0 %531
    %v533 = vsel %vm221, %v532, 0
    %535 = vmatprep.subr.mxu0 0.0
    %536 = vmatpush1.msra.mxu0 %v19
    %537 = vmatprep.subr.mxu0 0.0
    %538 = vmatpush1.msra.mxu0 %v20
    %539 = vmatprep.subr.mxu0 0.0
    %540 = vmatpush1.msra.mxu0 0.0
    %541 = vmatprep.subr.mxu0 0.0
    %542 = vmatpush1.msra.mxu0 0.0
    %543 = vmatprep.subr.mxu0 0.0
    %544 = vmatpush1.msra.mxu0 0.0
    %545 = vmatprep.subr.mxu0 0.0
    %546 = vmatpush1.msra.mxu0 0.0
    %547 = vmatprep.subr.mxu0 0.0
    %548 = vmatpush1.msra.mxu0 0.0
    %549 = vmatprep.subr.mxu0 0.0
    %550 = vmatpush1.msra.mxu0 0.0
    %551 = vmatprep.subr.mxu0 0.0
    %552 = vmatpush1.msra.mxu0 0.0
    %553 = vmatprep.subr.mxu0 0.0
    %554 = vmatpush1.msra.mxu0 0.0
    %555 = vmatprep.subr.mxu0 0.0
    %556 = vmatpush1.msra.mxu0 0.0
    %557 = vmatprep.subr.mxu0 0.0
    %558 = vmatpush1.msra.mxu0 0.0
    %559 = vmatprep.subr.mxu0 0.0
    %560 = vmatpush1.msra.mxu0 0.0
    %561 = vmatprep.subr.mxu0 0.0
    %562 = vmatpush1.msra.mxu0 0.0
    %563 = vmatprep.subr.mxu0 0.0
    %564 = vmatpush1.msra.mxu0 0.0
    %565 = vmatprep.subr.mxu0 0.0
    %566 = vmatpush1.msra.mxu0 0.0
    %567 = vmatprep.subr.mxu0 0.0
    %568 = vmatpush1.msra.mxu0 0.0
    %569 = vmatprep.subr.mxu0 0.0
    %570 = vmatpush1.msra.mxu0 0.0
    %571 = vmatprep.subr.mxu0 0.0
    %572 = vmatpush1.msra.mxu0 0.0
    %573 = vmatprep.subr.mxu0 0.0
    %574 = vmatpush1.msra.mxu0 0.0
    %575 = vmatprep.subr.mxu0 0.0
    %576 = vmatpush1.msra.mxu0 0.0
    %577 = vmatprep.subr.mxu0 0.0
    %578 = vmatpush1.msra.mxu0 0.0
    %579 = vmatprep.subr.mxu0 0.0
    %580 = vmatpush1.msra.mxu0 0.0
    %581 = vmatprep.subr.mxu0 0.0
    %582 = vmatpush1.msra.mxu0 0.0
    %583 = vmatprep.subr.mxu0 0.0
    %584 = vmatpush1.msra.mxu0 0.0
    %585 = vmatprep.subr.mxu0 0.0
    %586 = vmatpush1.msra.mxu0 0.0
    %587 = vmatprep.subr.mxu0 0.0
    %588 = vmatpush1.msra.mxu0 0.0
    %589 = vmatprep.subr.mxu0 0.0
    %590 = vmatpush1.msra.mxu0 0.0
    %591 = vmatprep.subr.mxu0 0.0
    %592 = vmatpush1.msra.mxu0 0.0
    %593 = vmatprep.subr.mxu0 0.0
    %594 = vmatpush1.msra.mxu0 0.0
    %595 = vmatprep.subr.mxu0 0.0
    %596 = vmatpush1.msra.mxu0 0.0
    %597 = vmatprep.subr.mxu0 0.0
    %598 = vmatpush1.msra.mxu0 0.0
    %599 = vmatprep.mubr.f32.mxu0 0.0
    %600 = vmatmul.mubr.f32.gmra.mrb[0].mxu0 %v533
    %v601 = vpop.f32.mrb[0].mxu0
    %v602 = vadd.f32 0.0, %v601
    %v603 = vpop.f32.mrb[0].mxu0
    %604 = vdwg.mxu0
    %v606 = vrot.slane %v602, 4
    %v608 = vadd.f32 %v129, %v606
    %v609 = vxor.u32 %v608, 2147483648
    %v610 = vmul.f32 %v609, 1.442695
    %v611 = vpow.pop %v610
    %v612 = vadd.f32 %v611, 1.0
    %v613 = vrcp.pop %v612
    %v614 = vmul.f32 1.0, %v613
    %v615 = vtanh.pop %v608
    %v617 = vrot.slane %v523, 4
    %v619 = vmul.f32 %v614, %v617
    %621 = vrot.lane.b32.xlu0 %v615, 96
    %v622 = vpop.permute.xlu0 %621
    %v624 = vmul.f32 %v614, %v622
    %626 = vrot.lane.b32.xlu0 %v624, 16
    %v627 = vpop.permute.xlu0 %626
    %v629 = vadd.f32 %v619, %v627
    %v630 = vtanh.pop %v629
    %632 = vrot.lane.b32.xlu0 %v630, 32
    %v633 = vpop.permute.xlu0 %632
    %v635 = vmul.f32 %v614, %v633
    %v637 = vrot.slane %v635, 4
    %638 = vrot.lane.b32.xlu0 %v637, 80
    %v639 = vpop.permute.xlu0 %638
    %v640 = vsel %vm221, %v639, 0
    %642 = vmatprep.subr.mxu0 0.0
    %643 = vmatpush1.msra.mxu0 %v19
    %644 = vmatprep.subr.mxu0 0.0
    %645 = vmatpush1.msra.mxu0 %v20
    %646 = vmatprep.subr.mxu0 0.0
    %647 = vmatpush1.msra.mxu0 0.0
    %648 = vmatprep.subr.mxu0 0.0
    %649 = vmatpush1.msra.mxu0 0.0
    %650 = vmatprep.subr.mxu0 0.0
    %651 = vmatpush1.msra.mxu0 0.0
    %652 = vmatprep.subr.mxu0 0.0
    %653 = vmatpush1.msra.mxu0 0.0
    %654 = vmatprep.subr.mxu0 0.0
    %655 = vmatpush1.msra.mxu0 0.0
    %656 = vmatprep.subr.mxu0 0.0
    %657 = vmatpush1.msra.mxu0 0.0
    %658 = vmatprep.subr.mxu0 0.0
    %659 = vmatpush1.msra.mxu0 0.0
    %660 = vmatprep.subr.mxu0 0.0
    %661 = vmatpush1.msra.mxu0 0.0
    %662 = vmatprep.subr.mxu0 0.0
    %663 = vmatpush1.msra.mxu0 0.0
    %664 = vmatprep.subr.mxu0 0.0
    %665 = vmatpush1.msra.mxu0 0.0
    %666 = vmatprep.subr.mxu0 0.0
    %667 = vmatpush1.msra.mxu0 0.0
    %668 = vmatprep.subr.mxu0 0.0
    %669 = vmatpush1.msra.mxu0 0.0
    %670 = vmatprep.subr.mxu0 0.0
    %671 = vmatpush1.msra.mxu0 0.0
    %672 = vmatprep.subr.mxu0 0.0
    %673 = vmatpush1.msra.mxu0 0.0
    %674 = vmatprep.subr.mxu0 0.0
    %675 = vmatpush1.msra.mxu0 0.0
    %676 = vmatprep.subr.mxu0 0.0
    %677 = vmatpush1.msra.mxu0 0.0
    %678 = vmatprep.subr.mxu0 0.0
    %679 = vmatpush1.msra.mxu0 0.0
    %680 = vmatprep.subr.mxu0 0.0
    %681 = vmatpush1.msra.mxu0 0.0
    %682 = vmatprep.subr.mxu0 0.0
    %683 = vmatpush1.msra.mxu0 0.0
    %684 = vmatprep.subr.mxu0 0.0
    %685 = vmatpush1.msra.mxu0 0.0
    %686 = vmatprep.subr.mxu0 0.0
    %687 = vmatpush1.msra.mxu0 0.0
    %688 = vmatprep.subr.mxu0 0.0
    %689 = vmatpush1.msra.mxu0 0.0
    %690 = vmatprep.subr.mxu0 0.0
    %691 = vmatpush1.msra.mxu0 0.0
    %692 = vmatprep.subr.mxu0 0.0
    %693 = vmatpush1.msra.mxu0 0.0
    %694 = vmatprep.subr.mxu0 0.0
    %695 = vmatpush1.msra.mxu0 0.0
    %696 = vmatprep.subr.mxu0 0.0
    %697 = vmatpush1.msra.mxu0 0.0
    %698 = vmatprep.subr.mxu0 0.0
    %699 = vmatpush1.msra.mxu0 0.0
    %700 = vmatprep.subr.mxu0 0.0
    %701 = vmatpush1.msra.mxu0 0.0
    %702 = vmatprep.subr.mxu0 0.0
    %703 = vmatpush1.msra.mxu0 0.0
    %704 = vmatprep.subr.mxu0 0.0
    %705 = vmatpush1.msra.mxu0 0.0
    %706 = vmatprep.mubr.f32.mxu0 0.0
    %707 = vmatmul.mubr.f32.gmra.mrb[0].mxu0 %v640
    %v708 = vpop.f32.mrb[0].mxu0
    %v709 = vadd.f32 0.0, %v708
    %v710 = vpop.f32.mrb[0].mxu0
    %711 = vdwg.mxu0
    %v712 = vadd.f32 %v134, %v709
    %v713 = vxor.u32 %v712, 2147483648
    %v714 = vmul.f32 %v713, 1.442695
    %v715 = vpow.pop %v714
    %v716 = vadd.f32 %v715, 1.0
    %v717 = vrcp.pop %v716
    %v718 = vmul.f32 1.0, %v717
    %v719 = vtanh.pop %v712
    %v721 = vrot.slane %v629, 4
    %v723 = vmul.f32 %v718, %v721
    %725 = vrot.lane.b32.xlu0 %v719, 96
    %v726 = vpop.permute.xlu0 %725
    %v728 = vmul.f32 %v718, %v726
    %730 = vrot.lane.b32.xlu0 %v728, 16
    %v731 = vpop.permute.xlu0 %730
    %v733 = vadd.f32 %v723, %v731
    %v734 = vtanh.pop %v733
    %736 = vrot.lane.b32.xlu0 %v734, 32
    %v737 = vpop.permute.xlu0 %736
    %v739 = vmul.f32 %v718, %v737
    %741 = vrot.lane.b32.xlu0 %v739, 80
    %v742 = vpop.permute.xlu0 %741
    %v743 = vsel %vm221, %v742, 0
    %745 = vmatprep.subr.mxu0 0.0
    %746 = vmatpush1.msra.mxu0 %v19
    %747 = vmatprep.subr.mxu0 0.0
    %748 = vmatpush1.msra.mxu0 %v20
    %749 = vmatprep.subr.mxu0 0.0
    %750 = vmatpush1.msra.mxu0 0.0
    %751 = vmatprep.subr.mxu0 0.0
    %752 = vmatpush1.msra.mxu0 0.0
    %753 = vmatprep.subr.mxu0 0.0
    %754 = vmatpush1.msra.mxu0 0.0
    %755 = vmatprep.subr.mxu0 0.0
    %756 = vmatpush1.msra.mxu0 0.0
    %757 = vmatprep.subr.mxu0 0.0
    %758 = vmatpush1.msra.mxu0 0.0
    %759 = vmatprep.subr.mxu0 0.0
    %760 = vmatpush1.msra.mxu0 0.0
    %761 = vmatprep.subr.mxu0 0.0
    %762 = vmatpush1.msra.mxu0 0.0
    %763 = vmatprep.subr.mxu0 0.0
    %764 = vmatpush1.msra.mxu0 0.0
    %765 = vmatprep.subr.mxu0 0.0
    %766 = vmatpush1.msra.mxu0 0.0
    %767 = vmatprep.subr.mxu0 0.0
    %768 = vmatpush1.msra.mxu0 0.0
    %769 = vmatprep.subr.mxu0 0.0
    %770 = vmatpush1.msra.mxu0 0.0
    %771 = vmatprep.subr.mxu0 0.0
    %772 = vmatpush1.msra.mxu0 0.0
    %773 = vmatprep.subr.mxu0 0.0
    %774 = vmatpush1.msra.mxu0 0.0
    %775 = vmatprep.subr.mxu0 0.0
    %776 = vmatpush1.msra.mxu0 0.0
    %777 = vmatprep.subr.mxu0 0.0
    %778 = vmatpush1.msra.mxu0 0.0
    %779 = vmatprep.subr.mxu0 0.0
    %780 = vmatpush1.msra.mxu0 0.0
    %781 = vmatprep.subr.mxu0 0.0
    %782 = vmatpush1.msra.mxu0 0.0
    %783 = vmatprep.subr.mxu0 0.0
    %784 = vmatpush1.msra.mxu0 0.0
    %785 = vmatprep.subr.mxu0 0.0
    %786 = vmatpush1.msra.mxu0 0.0
    %787 = vmatprep.subr.mxu0 0.0
    %788 = vmatpush1.msra.mxu0 0.0
    %789 = vmatprep.subr.mxu0 0.0
    %790 = vmatpush1.msra.mxu0 0.0
    %791 = vmatprep.subr.mxu0 0.0
    %792 = vmatpush1.msra.mxu0 0.0
    %793 = vmatprep.subr.mxu0 0.0
    %794 = vmatpush1.msra.mxu0 0.0
    %795 = vmatprep.subr.mxu0 0.0
    %796 = vmatpush1.msra.mxu0 0.0
    %797 = vmatprep.subr.mxu0 0.0
    %798 = vmatpush1.msra.mxu0 0.0
    %799 = vmatprep.subr.mxu0 0.0
    %800 = vmatpush1.msra.mxu0 0.0
    %801 = vmatprep.subr.mxu0 0.0
    %802 = vmatpush1.msra.mxu0 0.0
    %803 = vmatprep.subr.mxu0 0.0
    %804 = vmatpush1.msra.mxu0 0.0
    %805 = vmatprep.subr.mxu0 0.0
    %806 = vmatpush1.msra.mxu0 0.0
    %807 = vmatprep.subr.mxu0 0.0
    %808 = vmatpush1.msra.mxu0 0.0
    %809 = vmatprep.mubr.f32.mxu0 0.0
    %810 = vmatmul.mubr.f32.gmra.mrb[0].mxu0 %v743
    %v811 = vpop.f32.mrb[0].mxu0
    %v812 = vadd.f32 0.0, %v811
    %v813 = vpop.f32.mrb[0].mxu0
    %814 = vdwg.mxu0
    %v816 = vrot.slane %v812, 4
    %v818 = vadd.f32 %v134, %v816
    %v819 = vxor.u32 %v818, 2147483648
    %v820 = vmul.f32 %v819, 1.442695
    %v821 = vpow.pop %v820
    %v822 = vadd.f32 %v821, 1.0
    %v823 = vrcp.pop %v822
    %v824 = vmul.f32 1.0, %v823
    %v825 = vtanh.pop %v818
    %v827 = vrot.slane %v733, 4
    %v829 = vmul.f32 %v824, %v827
    %831 = vrot.lane.b32.xlu0 %v825, 96
    %v832 = vpop.permute.xlu0 %831
    %v834 = vmul.f32 %v824, %v832
    %836 = vrot.lane.b32.xlu0 %v834, 16
    %v837 = vpop.permute.xlu0 %836
    %v839 = vadd.f32 %v829, %v837
    %v840 = vtanh.pop %v839
    %842 = vrot.lane.b32.xlu0 %v840, 32
    %v843 = vpop.permute.xlu0 %842
    %v845 = vmul.f32 %v824, %v843
    %v847 = vrot.slane %v845, 4
    %848 = vrot.lane.b32.xlu0 %v847, 80
    %v849 = vpop.permute.xlu0 %848
    %v850 = vsel %vm221, %v849, 0
    %852 = vmatprep.subr.mxu0 0.0
    %853 = vmatpush1.msra.mxu0 %v19
    %854 = vmatprep.subr.mxu0 0.0
    %855 = vmatpush1.msra.mxu0 %v20
    %856 = vmatprep.subr.mxu0 0.0
    %857 = vmatpush1.msra.mxu0 0.0
    %858 = vmatprep.subr.mxu0 0.0
    %859 = vmatpush1.msra.mxu0 0.0
    %860 = vmatprep.subr.mxu0 0.0
    %861 = vmatpush1.msra.mxu0 0.0
    %862 = vmatprep.subr.mxu0 0.0
    %863 = vmatpush1.msra.mxu0 0.0
    %864 = vmatprep.subr.mxu0 0.0
    %865 = vmatpush1.msra.mxu0 0.0
    %866 = vmatprep.subr.mxu0 0.0
    %867 = vmatpush1.msra.mxu0 0.0
    %868 = vmatprep.subr.mxu0 0.0
    %869 = vmatpush1.msra.mxu0 0.0
    %870 = vmatprep.subr.mxu0 0.0
    %871 = vmatpush1.msra.mxu0 0.0
    %872 = vmatprep.subr.mxu0 0.0
    %873 = vmatpush1.msra.mxu0 0.0
    %874 = vmatprep.subr.mxu0 0.0
    %875 = vmatpush1.msra.mxu0 0.0
    %876 = vmatprep.subr.mxu0 0.0
    %877 = vmatpush1.msra.mxu0 0.0
    %878 = vmatprep.subr.mxu0 0.0
    %879 = vmatpush1.msra.mxu0 0.0
    %880 = vmatprep.subr.mxu0 0.0
    %881 = vmatpush1.msra.mxu0 0.0
    %882 = vmatprep.subr.mxu0 0.0
    %883 = vmatpush1.msra.mxu0 0.0
    %884 = vmatprep.subr.mxu0 0.0
    %885 = vmatpush1.msra.mxu0 0.0
    %886 = vmatprep.subr.mxu0 0.0
    %887 = vmatpush1.msra.mxu0 0.0
    %888 = vmatprep.subr.mxu0 0.0
    %889 = vmatpush1.msra.mxu0 0.0
    %890 = vmatprep.subr.mxu0 0.0
    %891 = vmatpush1.msra.mxu0 0.0
    %892 = vmatprep.subr.mxu0 0.0
    %893 = vmatpush1.msra.mxu0 0.0
    %894 = vmatprep.subr.mxu0 0.0
    %895 = vmatpush1.msra.mxu0 0.0
    %896 = vmatprep.subr.mxu0 0.0
    %897 = vmatpush1.msra.mxu0 0.0
    %898 = vmatprep.subr.mxu0 0.0
    %899 = vmatpush1.msra.mxu0 0.0
    %900 = vmatprep.subr.mxu0 0.0
    %901 = vmatpush1.msra.mxu0 0.0
    %902 = vmatprep.subr.mxu0 0.0
    %903 = vmatpush1.msra.mxu0 0.0
    %904 = vmatprep.subr.mxu0 0.0
    %905 = vmatpush1.msra.mxu0 0.0
    %906 = vmatprep.subr.mxu0 0.0
    %907 = vmatpush1.msra.mxu0 0.0
    %908 = vmatprep.subr.mxu0 0.0
    %909 = vmatpush1.msra.mxu0 0.0
    %910 = vmatprep.subr.mxu0 0.0
    %911 = vmatpush1.msra.mxu0 0.0
    %912 = vmatprep.subr.mxu0 0.0
    %913 = vmatpush1.msra.mxu0 0.0
    %914 = vmatprep.subr.mxu0 0.0
    %915 = vmatpush1.msra.mxu0 0.0
    %916 = vmatprep.mubr.f32.mxu0 0.0
    %917 = vmatmul.mubr.f32.gmra.mrb[0].mxu0 %v850
    %v918 = vpop.f32.mrb[0].mxu0
    %v919 = vadd.f32 0.0, %v918
    %v920 = vpop.f32.mrb[0].mxu0
    %921 = vdwg.mxu0
    %v922 = vadd.f32 %v139, %v919
    %v923 = vxor.u32 %v922, 2147483648
    %v924 = vmul.f32 %v923, 1.442695
    %v925 = vpow.pop %v924
    %v926 = vadd.f32 %v925, 1.0
    %v927 = vrcp.pop %v926
    %v928 = vmul.f32 1.0, %v927
    %v929 = vtanh.pop %v922
    %v931 = vrot.slane %v839, 4
    %v933 = vmul.f32 %v928, %v931
    %935 = vrot.lane.b32.xlu0 %v929, 96
    %v936 = vpop.permute.xlu0 %935
    %v938 = vmul.f32 %v928, %v936
    %940 = vrot.lane.b32.xlu0 %v938, 16
    %v941 = vpop.permute.xlu0 %940
    %v943 = vadd.f32 %v933, %v941
    %v944 = vtanh.pop %v943
    %946 = vrot.lane.b32.xlu0 %v944, 32
    %v947 = vpop.permute.xlu0 %946
    %v949 = vmul.f32 %v928, %v947
    %951 = vrot.lane.b32.xlu0 %v949, 80
    %v952 = vpop.permute.xlu0 %951
    %v953 = vsel %vm221, %v952, 0
    %955 = vmatprep.subr.mxu0 0.0
    %956 = vmatpush1.msra.mxu0 %v19
    %957 = vmatprep.subr.mxu0 0.0
    %958 = vmatpush1.msra.mxu0 %v20
    %959 = vmatprep.subr.mxu0 0.0
    %960 = vmatpush1.msra.mxu0 0.0
    %961 = vmatprep.subr.mxu0 0.0
    %962 = vmatpush1.msra.mxu0 0.0
    %963 = vmatprep.subr.mxu0 0.0
    %964 = vmatpush1.msra.mxu0 0.0
    %965 = vmatprep.subr.mxu0 0.0
    %966 = vmatpush1.msra.mxu0 0.0
    %967 = vmatprep.subr.mxu0 0.0
    %968 = vmatpush1.msra.mxu0 0.0
    %969 = vmatprep.subr.mxu0 0.0
    %970 = vmatpush1.msra.mxu0 0.0
    %971 = vmatprep.subr.mxu0 0.0
    %972 = vmatpush1.msra.mxu0 0.0
    %973 = vmatprep.subr.mxu0 0.0
    %974 = vmatpush1.msra.mxu0 0.0
    %975 = vmatprep.subr.mxu0 0.0
    %976 = vmatpush1.msra.mxu0 0.0
    %977 = vmatprep.subr.mxu0 0.0
    %978 = vmatpush1.msra.mxu0 0.0
    %979 = vmatprep.subr.mxu0 0.0
    %980 = vmatpush1.msra.mxu0 0.0
    %981 = vmatprep.subr.mxu0 0.0
    %982 = vmatpush1.msra.mxu0 0.0
    %983 = vmatprep.subr.mxu0 0.0
    %984 = vmatpush1.msra.mxu0 0.0
    %985 = vmatprep.subr.mxu0 0.0
    %986 = vmatpush1.msra.mxu0 0.0
    %987 = vmatprep.subr.mxu0 0.0
    %988 = vmatpush1.msra.mxu0 0.0
    %989 = vmatprep.subr.mxu0 0.0
    %990 = vmatpush1.msra.mxu0 0.0
    %991 = vmatprep.subr.mxu0 0.0
    %992 = vmatpush1.msra.mxu0 0.0
    %993 = vmatprep.subr.mxu0 0.0
    %994 = vmatpush1.msra.mxu0 0.0
    %995 = vmatprep.subr.mxu0 0.0
    %996 = vmatpush1.msra.mxu0 0.0
    %997 = vmatprep.subr.mxu0 0.0
    %998 = vmatpush1.msra.mxu0 0.0
    %999 = vmatprep.subr.mxu0 0.0
    %1000 = vmatpush1.msra.mxu0 0.0
    %1001 = vmatprep.subr.mxu0 0.0
    %1002 = vmatpush1.msra.mxu0 0.0
    %1003 = vmatprep.subr.mxu0 0.0
    %1004 = vmatpush1.msra.mxu0 0.0
    %1005 = vmatprep.subr.mxu0 0.0
    %1006 = vmatpush1.msra.mxu0 0.0
    %1007 = vmatprep.subr.mxu0 0.0
    %1008 = vmatpush1.msra.mxu0 0.0
    %1009 = vmatprep.subr.mxu0 0.0
    %1010 = vmatpush1.msra.mxu0 0.0
    %1011 = vmatprep.subr.mxu0 0.0
    %1012 = vmatpush1.msra.mxu0 0.0
    %1013 = vmatprep.subr.mxu0 0.0
    %1014 = vmatpush1.msra.mxu0 0.0
    %1015 = vmatprep.subr.mxu0 0.0
    %1016 = vmatpush1.msra.mxu0 0.0
    %1017 = vmatprep.subr.mxu0 0.0
    %1018 = vmatpush1.msra.mxu0 0.0
    %1019 = vmatprep.mubr.f32.mxu0 0.0
    %1020 = vmatmul.mubr.f32.gmra.mrb[0].mxu0 %v953
    %v1021 = vpop.f32.mrb[0].mxu0
    %v1022 = vadd.f32 0.0, %v1021
    %v1023 = vpop.f32.mrb[0].mxu0
    %1024 = vdwg.mxu0
    %v1026 = vrot.slane %v1022, 4
    %v1028 = vadd.f32 %v139, %v1026
    %v1029 = vxor.u32 %v1028, 2147483648
    %v1030 = vmul.f32 %v1029, 1.442695
    %v1031 = vpow.pop %v1030
    %v1032 = vadd.f32 %v1031, 1.0
    %v1033 = vrcp.pop %v1032
    %v1034 = vmul.f32 1.0, %v1033
    %v1035 = vtanh.pop %v1028
    %v1037 = vrot.slane %v943, 4
    %v1039 = vmul.f32 %v1034, %v1037
    %1041 = vrot.lane.b32.xlu0 %v1035, 96
    %v1042 = vpop.permute.xlu0 %1041
    %v1044 = vmul.f32 %v1034, %v1042
    %1046 = vrot.lane.b32.xlu0 %v1044, 16
    %v1047 = vpop.permute.xlu0 %1046
    %v1049 = vadd.f32 %v1039, %v1047
    %v1050 = vtanh.pop %v1049
    %1052 = vrot.lane.b32.xlu0 %v1050, 32
    %v1053 = vpop.permute.xlu0 %1052
    %v1055 = vmul.f32 %v1034, %v1053
    %vm1056 = vcmask 519552
    %v1057 = vsel %vm1056, %v319, 0.0
    %v1058 = vrot.slane %v1057, 4
    %v1059 = vadd.f32 %v1057, %v1058
    %v1060 = vrot.slane %v1059, 2
    %v1061 = vadd.f32 %v1059, %v1060
    %v1062 = vrot.slane %v1061, 1
    %v1063 = vadd.f32 %v1061, %v1062
    %v1064 = vrcp.pop 4.0
    %v1065 = vmul.f32 %v1063, %v1064
    %v1066 = vsub.f32 %v319, %v1065
    %v1067 = vmul.f32 %v1066, %v1066
    %v1068 = vsel %vm1056, %v1067, 0.0
    %v1069 = vrot.slane %v1068, 4
    %v1070 = vadd.f32 %v1068, %v1069
    %v1071 = vrot.slane %v1070, 2
    %v1072 = vadd.f32 %v1070, %v1071
    %v1073 = vrot.slane %v1072, 1
    %v1074 = vadd.f32 %v1072, %v1073
    %v1075 = vmul.f32 %v1074, %v1064
    %v1076 = vadd.f32 %v1075, 1e-05
    %v1077 = vrsqrt.pop %v1076
    %v1078 = vmul.f32 %v1066, %v1077
    %v1079 = vlaneseq
    %v1080 = vshrl.u32 %v1079, 7
    %v1081 = vsub.s32 0, %v1080
    %v1082 = vrot.slane %v22, %v1081
    %1084 = vrot.lane.b32.xlu0 %v1082, 48
    %v1085 = vpop.permute.xlu0 %1084
    %v1087 = vmul.f32 %v1078, %v1085
    %v1088 = vlaneseq
    %v1089 = vshrl.u32 %v1088, 7
    %v1090 = vsub.s32 0, %v1089
    %v1091 = vrot.slane %v23, %v1090
    %1093 = vrot.lane.b32.xlu0 %v1091, 48
    %v1094 = vpop.permute.xlu0 %1093
    %v1096 = vadd.f32 %v1087, %v1094
    %1098 = vrot.lane.b32.xlu0 %v25, 48
    %v1099 = vpop.permute.xlu0 %1098
    %v1101 = vmul.f32 %v1096, %v1099
    %v1102 = vsel %vm1056, %v1101, -inf
    %v1103 = vrot.slane %v1102, 4
    %v1104 = vmax.f32 %v1102, %v1103
    %v1105 = vrot.slane %v1104, 2
    %v1106 = vmax.f32 %v1104, %v1105
    %v1107 = vrot.slane %v1106, 1
    %v1108 = vmax.f32 %v1106, %v1107
    %v1110 = vsel %vm1056, %v427, 0.0
    %v1111 = vrot.slane %v1110, 4
    %v1112 = vadd.f32 %v1110, %v1111
    %v1113 = vrot.slane %v1112, 2
    %v1114 = vadd.f32 %v1112, %v1113
    %v1115 = vrot.slane %v1114, 1
    %v1116 = vadd.f32 %v1114, %v1115
    %v1117 = vmul.f32 %v1116, %v1064
    %v1118 = vsub.f32 %v425, %v1117
    %v1119 = vmul.f32 %v1118, %v1118
    %v1121 = vrot.slane %v1119, 4
    %v1123 = vsel %vm1056, %v1121, 0.0
    %v1124 = vrot.slane %v1123, 4
    %v1125 = vadd.f32 %v1123, %v1124
    %v1126 = vrot.slane %v1125, 2
    %v1127 = vadd.f32 %v1125, %v1126
    %v1128 = vrot.slane %v1127, 1
    %v1129 = vadd.f32 %v1127, %v1128
    %v1130 = vmul.f32 %v1129, %v1064
    %v1131 = vadd.f32 %v1130, 1e-05
    %v1132 = vrsqrt.pop %v1131
    %v1133 = vmul.f32 %v1118, %v1132
    %v1134 = vmul.f32 %v1133, %v1085
    %v1135 = vadd.f32 %v1134, %v1094
    %v1136 = vrot.slane %v25, 4
    %1137 = vrot.lane.b32.xlu0 %v1136, 48
    %v1138 = vpop.permute.xlu0 %1137
    %v1140 = vmul.f32 %v1135, %v1138
    %vm1141 = vcmask 523652
    %v1142 = vsel %vm1141, %v1140, -inf
    %v1143 = vrot.slane %v1142, 4
    %v1144 = vmax.f32 %v1142, %v1143
    %v1145 = vrot.slane %v1144, 2
    %v1146 = vmax.f32 %v1144, %v1145
    %v1147 = vrot.slane %v1146, 1
    %v1148 = vmax.f32 %v1146, %v1147
    %v1149 = vsel %vm1056, %v529, 0.0
    %v1150 = vrot.slane %v1149, 4
    %v1151 = vadd.f32 %v1149, %v1150
    %v1152 = vrot.slane %v1151, 2
    %v1153 = vadd.f32 %v1151, %v1152
    %v1154 = vrot.slane %v1153, 1
    %v1155 = vadd.f32 %v1153, %v1154
    %v1156 = vmul.f32 %v1155, %v1064
    %v1157 = vsub.f32 %v529, %v1156
    %v1158 = vmul.f32 %v1157, %v1157
    %v1159 = vsel %vm1056, %v1158, 0.0
    %v1160 = vrot.slane %v1159, 4
    %v1161 = vadd.f32 %v1159, %v1160
    %v1162 = vrot.slane %v1161, 2
    %v1163 = vadd.f32 %v1161, %v1162
    %v1164 = vrot.slane %v1163, 1
    %v1165 = vadd.f32 %v1163, %v1164
    %v1166 = vmul.f32 %v1165, %v1064
    %v1167 = vadd.f32 %v1166, 1e-05
    %v1168 = vrsqrt.pop %v1167
    %v1169 = vmul.f32 %v1157, %v1168
    %v1170 = vmul.f32 %v1169, %v1085
    %v1171 = vadd.f32 %v1170, %v1094
    %v1172 = vmul.f32 %v1171, %v1099
    %v1173 = vsel %vm1056, %v1172, -inf
    %v1174 = vrot.slane %v1173, 4
    %v1175 = vmax.f32 %v1173, %v1174
    %v1176 = vrot.slane %v1175, 2
    %v1177 = vmax.f32 %v1175, %v1176
    %v1178 = vrot.slane %v1177, 1
    %v1179 = vmax.f32 %v1177, %v1178
    %v1181 = vsel %vm1056, %v637, 0.0
    %v1182 = vrot.slane %v1181, 4
    %v1183 = vadd.f32 %v1181, %v1182
    %v1184 = vrot.slane %v1183, 2
    %v1185 = vadd.f32 %v1183, %v1184
    %v1186 = vrot.slane %v1185, 1
    %v1187 = vadd.f32 %v1185, %v1186
    %v1188 = vmul.f32 %v1187, %v1064
    %v1189 = vsub.f32 %v635, %v1188
    %v1190 = vmul.f32 %v1189, %v1189
    %v1192 = vrot.slane %v1190, 4
    %v1194 = vsel %vm1056, %v1192, 0.0
    %v1195 = vrot.slane %v1194, 4
    %v1196 = vadd.f32 %v1194, %v1195
    %v1197 = vrot.slane %v1196, 2
    %v1198 = vadd.f32 %v1196, %v1197
    %v1199 = vrot.slane %v1198, 1
    %v1200 = vadd.f32 %v1198, %v1199
    %v1201 = vmul.f32 %v1200, %v1064
    %v1202 = vadd.f32 %v1201, 1e-05
    %v1203 = vrsqrt.pop %v1202
    %v1204 = vmul.f32 %v1189, %v1203
    %v1205 = vmul.f32 %v1204, %v1085
    %v1206 = vadd.f32 %v1205, %v1094
    %v1207 = vmul.f32 %v1206, %v1138
    %v1208 = vsel %vm1141, %v1207, -inf
    %v1209 = vrot.slane %v1208, 4
    %v1210 = vmax.f32 %v1208, %v1209
    %v1211 = vrot.slane %v1210, 2
    %v1212 = vmax.f32 %v1210, %v1211
    %v1213 = vrot.slane %v1212, 1
    %v1214 = vmax.f32 %v1212, %v1213
    %v1215 = vsel %vm1056, %v739, 0.0
    %v1216 = vrot.slane %v1215, 4
    %v1217 = vadd.f32 %v1215, %v1216
    %v1218 = vrot.slane %v1217, 2
    %v1219 = vadd.f32 %v1217, %v1218
    %v1220 = vrot.slane %v1219, 1
    %v1221 = vadd.f32 %v1219, %v1220
    %v1222 = vmul.f32 %v1221, %v1064
    %v1223 = vsub.f32 %v739, %v1222
    %v1224 = vmul.f32 %v1223, %v1223
    %v1225 = vsel %vm1056, %v1224, 0.0
    %v1226 = vrot.slane %v1225, 4
    %v1227 = vadd.f32 %v1225, %v1226
    %v1228 = vrot.slane %v1227, 2
    %v1229 = vadd.f32 %v1227, %v1228
    %v1230 = vrot.slane %v1229, 1
    %v1231 = vadd.f32 %v1229, %v1230
    %v1232 = vmul.f32 %v1231, %v1064
    %v1233 = vadd.f32 %v1232, 1e-05
    %v1234 = vrsqrt.pop %v1233
    %v1235 = vmul.f32 %v1223, %v1234
    %v1236 = vmul.f32 %v1235, %v1085
    %v1237 = vadd.f32 %v1236, %v1094
    %v1238 = vmul.f32 %v1237, %v1099
    %v1239 = vsel %vm1056, %v1238, -inf
    %v1240 = vrot.slane %v1239, 4
    %v1241 = vmax.f32 %v1239, %v1240
    %v1242 = vrot.slane %v1241, 2
    %v1243 = vmax.f32 %v1241, %v1242
    %v1244 = vrot.slane %v1243, 1
    %v1245 = vmax.f32 %v1243, %v1244
    %v1247 = vsel %vm1056, %v847, 0.0
    %v1248 = vrot.slane %v1247, 4
    %v1249 = vadd.f32 %v1247, %v1248
    %v1250 = vrot.slane %v1249, 2
    %v1251 = vadd.f32 %v1249, %v1250
    %v1252 = vrot.slane %v1251, 1
    %v1253 = vadd.f32 %v1251, %v1252
    %v1254 = vmul.f32 %v1253, %v1064
    %v1255 = vsub.f32 %v845, %v1254
    %v1256 = vmul.f32 %v1255, %v1255
    %v1258 = vrot.slane %v1256, 4
    %v1260 = vsel %vm1056, %v1258, 0.0
    %v1261 = vrot.slane %v1260, 4
    %v1262 = vadd.f32 %v1260, %v1261
    %v1263 = vrot.slane %v1262, 2
    %v1264 = vadd.f32 %v1262, %v1263
    %v1265 = vrot.slane %v1264, 1
    %v1266 = vadd.f32 %v1264, %v1265
    %v1267 = vmul.f32 %v1266, %v1064
    %v1268 = vadd.f32 %v1267, 1e-05
    %v1269 = vrsqrt.pop %v1268
    %v1270 = vmul.f32 %v1255, %v1269
    %v1271 = vmul.f32 %v1270, %v1085
    %v1272 = vadd.f32 %v1271, %v1094
    %v1273 = vmul.f32 %v1272, %v1138
    %v1274 = vsel %vm1141, %v1273, -inf
    %v1275 = vrot.slane %v1274, 4
    %v1276 = vmax.f32 %v1274, %v1275
    %v1277 = vrot.slane %v1276, 2
    %v1278 = vmax.f32 %v1276, %v1277
    %v1279 = vrot.slane %v1278, 1
    %v1280 = vmax.f32 %v1278, %v1279
    %v1281 = vsel %vm1056, %v949, 0.0
    %v1282 = vrot.slane %v1281, 4
    %v1283 = vadd.f32 %v1281, %v1282
    %v1284 = vrot.slane %v1283, 2
    %v1285 = vadd.f32 %v1283, %v1284
    %v1286 = vrot.slane %v1285, 1
    %v1287 = vadd.f32 %v1285, %v1286
    %v1288 = vmul.f32 %v1287, %v1064
    %v1289 = vsub.f32 %v949, %v1288
    %v1290 = vmul.f32 %v1289, %v1289
    %v1291 = vsel %vm1056, %v1290, 0.0
    %v1292 = vrot.slane %v1291, 4
    %v1293 = vadd.f32 %v1291, %v1292
    %v1294 = vrot.slane %v1293, 2
    %v1295 = vadd.f32 %v1293, %v1294
    %v1296 = vrot.slane %v1295, 1
    %v1297 = vadd.f32 %v1295, %v1296
    %v1298 = vmul.f32 %v1297, %v1064
    %v1299 = vadd.f32 %v1298, 1e-05
    %v1300 = vrsqrt.pop %v1299
    %v1301 = vmul.f32 %v1289, %v1300
    %v1302 = vmul.f32 %v1301, %v1085
    %v1303 = vadd.f32 %v1302, %v1094
    %v1304 = vmul.f32 %v1303, %v1099
    %v1305 = vsel %vm1056, %v1304, -inf
    %v1306 = vrot.slane %v1305, 4
    %v1307 = vmax.f32 %v1305, %v1306
    %v1308 = vrot.slane %v1307, 2
    %v1309 = vmax.f32 %v1307, %v1308
    %v1310 = vrot.slane %v1309, 1
    %v1311 = vmax.f32 %v1309, %v1310
    %v1313 = vrot.slane %v1055, 4
    %v1315 = vsel %vm1056, %v1313, 0.0
    %v1316 = vrot.slane %v1315, 4
    %v1317 = vadd.f32 %v1315, %v1316
    %v1318 = vrot.slane %v1317, 2
    %v1319 = vadd.f32 %v1317, %v1318
    %v1320 = vrot.slane %v1319, 1
    %v1321 = vadd.f32 %v1319, %v1320
    %v1322 = vmul.f32 %v1321, %v1064
    %v1323 = vsub.f32 %v1055, %v1322
    %v1324 = vmul.f32 %v1323, %v1323
    %v1326 = vrot.slane %v1324, 4
    %v1328 = vsel %vm1056, %v1326, 0.0
    %v1329 = vrot.slane %v1328, 4
    %v1330 = vadd.f32 %v1328, %v1329
    %v1331 = vrot.slane %v1330, 2
    %v1332 = vadd.f32 %v1330, %v1331
    %v1333 = vrot.slane %v1332, 1
    %v1334 = vadd.f32 %v1332, %v1333
    %v1335 = vmul.f32 %v1334, %v1064
    %v1336 = vadd.f32 %v1335, 1e-05
    %v1337 = vrsqrt.pop %v1336
    %v1338 = vmul.f32 %v1323, %v1337
    %v1339 = vmul.f32 %v1338, %v1085
    %v1340 = vadd.f32 %v1339, %v1094
    %v1341 = vmul.f32 %v1340, %v1138
    %v1342 = vsel %vm1141, %v1341, -inf
    %v1343 = vrot.slane %v1342, 4
    %v1344 = vmax.f32 %v1342, %v1343
    %v1345 = vrot.slane %v1344, 2
    %v1346 = vmax.f32 %v1344, %v1345
    %v1347 = vrot.slane %v1346, 1
    %v1348 = vmax.f32 %v1346, %v1347
    %vm1349 = vcmask 1040384
    %v1350 = vsel %vm1349, %v1108, %v1148
    %v1351 = vsel %vm147, %v1350, %v1179
    %v1352 = vsel %vm53, %v1351, %v1214
    %vm1353 = vcmask 1043456
    %v1354 = vsel %vm1353, %v1352, %v1245
    %vm1355 = vcmask 1044480
    %v1356 = vsel %vm1355, %v1354, %v1280
    %vm1357 = vcmask 1045504
    %v1358 = vsel %vm1357, %v1356, %v1311
    %vm1359 = vcmask 1046528
    %v1360 = vsel %vm1359, %v1358, %v1348
    %1362 = vrot.lane.b32.xlu0 %v1360, 80
    %v1363 = vpop.permute.xlu0 %1362
    %v1364 = vsel %vm221, %v1363, 0
    %1366 = vmatprep.subr.mxu0 0.0
    %1367 = vmatpush1.msra.mxu0 %v26
    %1368 = vmatprep.subr.mxu0 0.0
    %1369 = vmatpush1.msra.mxu0 %v27
    %1370 = vmatprep.subr.mxu0 0.0
    %1371 = vmatpush1.msra.mxu0 0.0
    %1372 = vmatprep.subr.mxu0 0.0
    %1373 = vmatpush1.msra.mxu0 0.0
    %1374 = vmatprep.subr.mxu0 0.0
    %1375 = vmatpush1.msra.mxu0 0.0
    %1376 = vmatprep.subr.mxu0 0.0
    %1377 = vmatpush1.msra.mxu0 0.0
    %1378 = vmatprep.subr.mxu0 0.0
    %1379 = vmatpush1.msra.mxu0 0.0
    %1380 = vmatprep.subr.mxu0 0.0
    %1381 = vmatpush1.msra.mxu0 0.0
    %1382 = vmatprep.subr.mxu0 0.0
    %1383 = vmatpush1.msra.mxu0 0.0
    %1384 = vmatprep.subr.mxu0 0.0
    %1385 = vmatpush1.msra.mxu0 0.0
    %1386 = vmatprep.subr.mxu0 0.0
    %1387 = vmatpush1.msra.mxu0 0.0
    %1388 = vmatprep.subr.mxu0 0.0
    %1389 = vmatpush1.msra.mxu0 0.0
    %1390 = vmatprep.subr.mxu0 0.0
    %1391 = vmatpush1.msra.mxu0 0.0
    %1392 = vmatprep.subr.mxu0 0.0
    %1393 = vmatpush1.msra.mxu0 0.0
    %1394 = vmatprep.subr.mxu0 0.0
    %1395 = vmatpush1.msra.mxu0 0.0
    %1396 = vmatprep.subr.mxu0 0.0
    %1397 = vmatpush1.msra.mxu0 0.0
    %1398 = vmatprep.subr.mxu0 0.0
    %1399 = vmatpush1.msra.mxu0 0.0
    %1400 = vmatprep.subr.mxu0 0.0
    %1401 = vmatpush1.msra.mxu0 0.0
    %1402 = vmatprep.subr.mxu0 0.0
    %1403 = vmatpush1.msra.mxu0 0.0
    %1404 = vmatprep.subr.mxu0 0.0
    %1405 = vmatpush1.msra.mxu0 0.0
    %1406 = vmatprep.subr.mxu0 0.0
    %1407 = vmatpush1.msra.mxu0 0.0
    %1408 = vmatprep.subr.mxu0 0.0
    %1409 = vmatpush1.msra.mxu0 0.0
    %1410 = vmatprep.subr.mxu0 0.0
    %1411 = vmatpush1.msra.mxu0 0.0
    %1412 = vmatprep.subr.mxu0 0.0
    %1413 = vmatpush1.msra.mxu0 0.0
    %1414 = vmatprep.subr.mxu0 0.0
    %1415 = vmatpush1.msra.mxu0 0.0
    %1416 = vmatprep.subr.mxu0 0.0
    %1417 = vmatpush1.msra.mxu0 0.0
    %1418 = vmatprep.subr.mxu0 0.0
    %1419 = vmatpush1.msra.mxu0 0.0
    %1420 = vmatprep.subr.mxu0 0.0
    %1421 = vmatpush1.msra.mxu0 0.0
    %1422 = vmatprep.subr.mxu0 0.0
    %1423 = vmatpush1.msra.mxu0 0.0
    %1424 = vmatprep.subr.mxu0 0.0
    %1425 = vmatpush1.msra.mxu0 0.0
    %1426 = vmatprep.subr.mxu0 0.0
    %1427 = vmatpush1.msra.mxu0 0.0
    %1428 = vmatprep.subr.mxu0 0.0
    %1429 = vmatpush1.msra.mxu0 0.0
    %1430 = vmatprep.mubr.f32.mxu0 0.0
    %1431 = vmatmul.mubr.f32.gmra.mrb[0].mxu0 %v1364
    %v1432 = vpop.f32.mrb[0].mxu0
    %v1433 = vadd.f32 %v218, %v1432
    %v1434 = vpop.f32.mrb[0].mxu0
    %1435 = vdwg.mxu0
    %v1436 = vlaneseq
    %v1437 = vshrl.u32 %v1436, 7
    %v1438 = vsub.s32 0, %v1437
    %v1439 = vrot.slane %v24, %v1438
    %v1440 = vadd.f32 %v1433, %v1439
    %1441 = vst.msk [vmem:[#allocation2] sm:$0xff] %vm143, %v1440
    // Predicated region
    $region14: #{tpu_custom_call.1} parent=1 // pred_check
      _
    $region15: #{tpu_custom_call.1} parent=1 // pred_check_branch
      %1443 = sbr.rel (0) target = $region17
    $region16: #{tpu_custom_call.1} parent=1 // pred_region
      %s1445 = ssub.s32 128, 128
      %1446 = vsyncadd [#allocation3], %s1445
      %s1448 = sshll.u32 [#allocation2], 4
      %s1449 = int_to_ptr.vmem [resolvable:$true] %s1448
      %1451 = dma.vmem_to_hbm [thread:$0]  %s1449, 128, %s3, [#allocation3]
    $region17: #{tpu_custom_call.1} parent=1 // pred_fallthru
      _
    // Predicated region
    $region18: #{tpu_custom_call.1} parent=1 // pred_check
      _
    $region19: #{tpu_custom_call.1} parent=1 // pred_check_branch
      %1453 = sbr.rel (0) target = $region21
    $region20: #{tpu_custom_call.1} parent=1 // pred_region
      %1454 = dma.done [#allocation3], 128
    $region21: #{tpu_custom_call.1} parent=1 // pred_fallthru
      _
    %1455 = vsyncpa [#allocation3], 1

</llo_original>
